<compile_context>
chip_gen: v5e
topology: v5e:2x2
jax: 0.10.0
libtpu: 0.0.40
codegen_flags: <defaults>
</compile_context>

<pallas_src>
import jax
import jax.numpy as jnp
import numpy as np
from jax.experimental import pallas as pl
from jax.experimental.pallas import tpu as pltpu

HIDDEN = 256      # hard-coded in the PyTorch module (fc -> 256, LSTMCell(256, 256))
HEAD_PAD = 128    # lane-dense packed width for the fused critic+actor output


def _vmem():
    # Small, untiled operands: whole array resident in VMEM, no grid.
    return pl.BlockSpec(memory_space=pltpu.MemorySpace.VMEM)


# ---------------------------------------------------------------------------
# Fused kernel: TextCNN (shift-accumulated matmuls) + ReLU + masked max-pool
#               + fused (fc∘LSTM-gate) matmul + cell update + packed heads
# ---------------------------------------------------------------------------
def a3c_fused_kernel(x_ref, cw_ref, cb_ref, mask_ref,
                     wcat_ref, bcat_ref,
                     hx_ref, cx_ref,
                     hw_ref, hb_ref,
                     head_ref, hxo_ref, cxo_ref):
    H = HIDDEN
    B = x_ref.shape[0]
    kmax, _, c_pad = cw_ref.shape          # merged conv weight: [Kmax, E, Cpad] (bf16)
    t_blk = mask_ref.shape[0]              # 8-aligned pooled-time block

    # --- conv: Kmax accumulation matmuls, batch merged along sublanes,
    #     all kernel widths merged into the lane-dense Cpad output.
    acc = jnp.zeros((B * t_blk, c_pad), jnp.float32)
    for k in range(kmax):                  # static unroll (Kmax = 5)
        xk = jnp.concatenate([x_ref[b, k:k + t_blk, :] for b in range(B)],
                             axis=0)                            # [B*t_blk, E]
        acc = acc + jnp.dot(xk.astype(cw_ref.dtype), cw_ref[k],
                            preferred_element_type=jnp.float32)

    # ReLU, zero the time positions invalid for each kernel size / batch pad
    # (relu >= 0, so a zeroed position never wins the max), then max over time.
    mask_full = jnp.concatenate([mask_ref[...]] * B, axis=0)    # [B*t_blk, Cpad]
    acc = jnp.maximum(acc + cb_ref[...], 0.0) * mask_full
    feat = jnp.concatenate(
        [jnp.max(acc[b * t_blk:(b + 1) * t_blk, :], axis=0, keepdims=True)
         for b in range(B)], axis=0)                            # [B, Cpad]

    # --- fused fc + LSTMCell gates: ONE bf16 MXU matmul (PyTorch order i,f,g,o)
    cat = jnp.concatenate([feat, hx_ref[...]], axis=1)          # [B, Cpad + H]
    gates = (jnp.dot(cat.astype(wcat_ref.dtype), wcat_ref[...],
                     preferred_element_type=jnp.float32)
             + bcat_ref[...])                                   # [B, 4H] f32
    i = jax.nn.sigmoid(gates[:, 0 * H:1 * H])
    f = jax.nn.sigmoid(gates[:, 1 * H:2 * H])
    g = jnp.tanh(gates[:, 2 * H:3 * H])
    o = jax.nn.sigmoid(gates[:, 3 * H:4 * H])
    cx_new = f * cx_ref[...] + i * g
    hx_new = o * jnp.tanh(cx_new)

    # --- heads: single lane-dense [B, 128] store (col 0 critic, 1..A actor)
    head_ref[...] = (jnp.dot(hx_new.astype(hw_ref.dtype), hw_ref[...],
                             preferred_element_type=jnp.float32)
                     + hb_ref[...])
    hxo_ref[...] = hx_new
    cxo_ref[...] = cx_new


# ---------------------------------------------------------------------------
# Wrapper forward (jitted; action_dim static)
# ---------------------------------------------------------------------------
def _forward_impl(params, x, hx, cx, *, action_dim):
    # x: [B, 1, T, E] (NCHW, in_channels = 1); hx, cx: [B, 256]
    B, _, T, E = x.shape
    kmax = params["conv_w"].shape[0]
    t_blk = params["mask"].shape[0]
    pad_t = t_blk + kmax - 1 - T           # pad time so every shift has t_blk rows
    x_pad = jnp.pad(x[:, 0], ((0, 0), (0, pad_t), (0, 0)))

    head_out, hx_new, cx_new = pl.pallas_call(
        a3c_fused_kernel,
        out_shape=(
            jax.ShapeDtypeStruct((B, HEAD_PAD), jnp.float32),   # packed critic+actor
            jax.ShapeDtypeStruct((B, HIDDEN), jnp.float32),     # hx
            jax.ShapeDtypeStruct((B, HIDDEN), jnp.float32),     # cx
        ),
        in_specs=[_vmem()] * 10,
        out_specs=(_vmem(), _vmem(), _vmem()),
        # hx -> hx_out, cx -> cx_out: recurrent state updated in place when the
        # caller donates it (otherwise XLA inserts a protective copy).
        input_output_aliases={6: 1, 7: 2},
    )(x_pad, params["conv_w"], params["conv_b"], params["mask"],
      params["w_cat"], params["b_cat"], hx, cx,
      params["head_w"], params["head_b"])

    critic = head_out[:, :1]
    actor = head_out[:, 1:1 + action_dim]
    return critic, actor, hx_new, cx_new


a3c_lstm_forward = jax.jit(_forward_impl, static_argnames=("action_dim",))


# ---------------------------------------------------------------------------
# Deterministic parameter init (shapes per A3Clstm.__init__), kernel-ready layouts
# ---------------------------------------------------------------------------
def init_params(key, kernel_sizes, kernel_dim, embedding_dim, action_dim, seq_len):
    H = HIDDEN
    E = embedding_dim
    nK = len(kernel_sizes)
    F = nK * kernel_dim
    kmax, kmin = max(kernel_sizes), min(kernel_sizes)
    t_out = seq_len - kmin + 1
    t_blk = ((t_out + 7) // 8) * 8                 # sublane-aligned pooled block
    c_pad = ((F + 127) // 128) * 128               # lane-dense conv-output width
    keys = iter(jax.random.split(key, 64))

    def uni(shape, bound):
        return np.asarray(
            jax.random.uniform(next(keys), shape, jnp.float32, -bound, bound))

    conv_w, conv_b = [], []
    for K in kernel_sizes:
        fan_in = 1 * K * E
        fan_out = K * E * kernel_dim
        wb = float(np.sqrt(6.0 / (fan_in + fan_out)))
        conv_w.append(uni((kernel_dim, 1, K, E), wb))       # PyTorch conv layout
        conv_b.append(uni((kernel_dim,), 1.0 / np.sqrt(fan_in)))

    # Merged, MXU-ready conv weight [Kmax, E, Cpad]; zero slices where k >= K_j
    # or channel >= F.  Bias + time-validity mask precomputed once here.
    conv_wm = np.zeros((kmax, E, c_pad), np.float32)
    conv_bm = np.zeros((1, c_pad), np.float32)
    mask = np.zeros((t_blk, c_pad), np.float32)
    for j, (K, w, b) in enumerate(zip(kernel_sizes, conv_w, conv_b)):
        lo, hi = j * kernel_dim, (j + 1) * kernel_dim
        for k in range(K):
            conv_wm[k, :, lo:hi] = w[:, 0, k, :].T
        conv_bm[0, lo:hi] = b
        mask[:seq_len - K + 1, lo:hi] = 1.0

    def linear(in_dim, out_dim):
        wb = float(np.sqrt(6.0 / (in_dim + out_dim)))
        return uni((out_dim, in_dim), wb), uni((out_dim,), 1.0 / np.sqrt(in_dim))

    fc_w, fc_b = linear(F, H)
    kk = 1.0 / np.sqrt(H)
    w_ih = uni((4 * H, H), kk)
    w_hh = uni((4 * H, H), kk)
    b_ih = uni((4 * H,), kk)
    b_hh = uni((4 * H,), kk)
    critic_w, critic_b = linear(H, 1)
    actor_w, actor_b = linear(H, action_dim)

    # Fold fc into the LSTM input projection and merge with the recurrent
    # projection: gates = [feat_pad, hx] @ W_cat + b_cat.
    w_x = fc_w.T @ w_ih.T                                    # [F, 4H]
    b_x = fc_b @ w_ih.T + b_ih                               # [4H]
    w_cat = np.zeros((c_pad + H, 4 * H), np.float32)
    w_cat[:F, :] = w_x                                       # rows F..Cpad stay 0
    w_cat[c_pad:, :] = w_hh.T
    b_cat = (b_x + b_hh).reshape(1, 4 * H)

    # Fused, lane-dense head: col 0 = critic, cols 1..A = actor, rest zero.
    head_w = np.zeros((H, HEAD_PAD), np.float32)
    head_b = np.zeros((1, HEAD_PAD), np.float32)
    head_w[:, 0] = critic_w[0]
    head_b[0, 0] = critic_b[0]
    head_w[:, 1:1 + action_dim] = actor_w.T
    head_b[0, 1:1 + action_dim] = actor_b

    j32 = lambda a: jnp.asarray(a, jnp.float32)
    jbf = lambda a: jnp.asarray(a, jnp.bfloat16)   # big weights DMA'd as bf16

    params = {   # kernel-ready, arrays only (safe to pass through jit)
        "conv_w": jbf(conv_wm), "conv_b": j32(conv_bm), "mask": j32(mask),
        "w_cat": jbf(w_cat), "b_cat": j32(b_cat),
        "head_w": jbf(head_w), "head_b": j32(head_b),
    }
    ref = {      # PyTorch-layout f32 copies used only by the pure-JAX reference
        "kernel_sizes": tuple(kernel_sizes),
        "conv_w": [j32(w) for w in conv_w], "conv_b": [j32(b) for b in conv_b],
        "fc_w": j32(fc_w.T), "fc_b": j32(fc_b.reshape(1, -1)),
        "w_ih": j32(w_ih.T), "b_ih": j32(b_ih.reshape(1, -1)),
        "w_hh": j32(w_hh.T), "b_hh": j32(b_hh.reshape(1, -1)),
        "critic_w": j32(critic_w.T), "critic_b": j32(critic_b.reshape(1, -1)),
        "actor_w": j32(actor_w.T), "actor_b": j32(actor_b.reshape(1, -1)),
    }
    return params, ref


# ---------------------------------------------------------------------------
# Pure-JAX f32 reference (unfused math) for a sanity check
# ---------------------------------------------------------------------------
def a3c_lstm_reference(ref, x, hx, cx):
    B, _, T, E = x.shape
    xsq = x[:, 0]
    pooled = []
    for K, w, b in zip(ref["kernel_sizes"], ref["conv_w"], ref["conv_b"]):
        T_out = T - K + 1
        wk = w.reshape(w.shape[0], K * E)             # [C, K*E]
        cols = jnp.stack(
            [xsq[:, t:t + K, :].reshape(B, K * E) for t in range(T_out)], axis=1)
        conv = cols @ wk.T + b[None, None, :]         # [B, T_out, C]
        pooled.append(jnp.max(jax.nn.relu(conv), axis=1))
    feat = jnp.concatenate(pooled, 1)
    x1 = feat @ ref["fc_w"] + ref["fc_b"]
    gates = (x1 @ ref["w_ih"] + ref["b_ih"] + hx @ ref["w_hh"] + ref["b_hh"])
    i, f, g, o = jnp.split(gates, 4, axis=1)
    i, f, o = jax.nn.sigmoid(i), jax.nn.sigmoid(f), jax.nn.sigmoid(o)
    g = jnp.tanh(g)
    cx_n = f * cx + i * g
    hx_n = o * jnp.tanh(cx_n)
    return (hx_n @ ref["critic_w"] + ref["critic_b"],
            hx_n @ ref["actor_w"] + ref["actor_b"], hx_n, cx_n)


if __name__ == "__main__":
    # Small, module-consistent config
    B = 2
    T = 16                 # sequence length (conv "height")
    embedding_dim = 16
    kernel_sizes = (3, 4, 5)
    kernel_dim = 8
    action_dim = 4

    key = jax.random.PRNGKey(0)
    kp, kx, kh, kc = jax.random.split(key, 4)
    params, ref = init_params(kp, kernel_sizes, kernel_dim, embedding_dim,
                              action_dim, T)

    x = jax.random.normal(kx, (B, 1, T, embedding_dim), jnp.float32)
    hx = jax.random.normal(kh, (B, HIDDEN), jnp.float32) * 0.1
    cx = jax.random.normal(kc, (B, HIDDEN), jnp.float32) * 0.1

    critic, actor, hx_new, cx_new = a3c_lstm_forward(params, x, hx, cx,
                                                     action_dim=action_dim)
    jax.block_until_ready((critic, actor, hx_new, cx_new))

    # Sanity check against the pure-JAX f32 reference.  Kernel weights are
    # bf16 on the MXU (f32 accumulation), hence the slightly looser tolerance.
    rc, ra, rh, rcx = a3c_lstm_reference(ref, x, hx, cx)
    np.testing.assert_allclose(np.asarray(critic), np.asarray(rc), atol=2e-2, rtol=2e-2)
    np.testing.assert_allclose(np.asarray(actor), np.asarray(ra), atol=2e-2, rtol=2e-2)
    np.testing.assert_allclose(np.asarray(hx_new), np.asarray(rh), atol=2e-2, rtol=2e-2)
    np.testing.assert_allclose(np.asarray(cx_new), np.asarray(rcx), atol=2e-2, rtol=2e-2)

    print("KERNEL_OK")
</pallas_src>

<mosaic_0001>
module attributes {stable_mosaic.version = 11 : i64} {
  func.func @a3c_fused_kernel(%arg0: memref<2x20x16xf32, #tpu.memory_space<vmem>>, %arg1: memref<5x16x128xbf16, #tpu.memory_space<vmem>>, %arg2: memref<1x128xf32, #tpu.memory_space<vmem>>, %arg3: memref<16x128xf32, #tpu.memory_space<vmem>>, %arg4: memref<384x1024xbf16, #tpu.memory_space<vmem>>, %arg5: memref<1x1024xf32, #tpu.memory_space<vmem>>, %arg6: memref<2x256xf32, #tpu.memory_space<vmem>>, %arg7: memref<2x256xf32, #tpu.memory_space<vmem>>, %arg8: memref<256x128xbf16, #tpu.memory_space<vmem>>, %arg9: memref<1x128xf32, #tpu.memory_space<vmem>>, %arg10: memref<2x128xf32, #tpu.memory_space<vmem>>, %arg11: memref<2x256xf32, #tpu.memory_space<vmem>>, %arg12: memref<2x256xf32, #tpu.memory_space<vmem>>) attributes {dimension_semantics = [], scalar_prefetch = 0 : i64, scratch_operands = 0 : i64, tpu.core_type = #tpu.core_type<tc>} {
    %cst = arith.constant 0.000000e+00 : f32
    %0 = vector.broadcast %cst : f32 to vector<32x128xf32>
    %c0 = arith.constant 0 : index
    %c0_0 = arith.constant 0 : index
    %c0_1 = arith.constant 0 : index
    %1 = vector.load %arg0[%c0, %c0_0, %c0_1] : memref<2x20x16xf32, #tpu.memory_space<vmem>>, vector<1x16x16xf32>
    %2 = vector.shape_cast %1 : vector<1x16x16xf32> to vector<16x16xf32>
    %c1 = arith.constant 1 : index
    %c0_2 = arith.constant 0 : index
    %c0_3 = arith.constant 0 : index
    %3 = vector.load %arg0[%c1, %c0_2, %c0_3] : memref<2x20x16xf32, #tpu.memory_space<vmem>>, vector<1x16x16xf32>
    %4 = vector.shape_cast %3 : vector<1x16x16xf32> to vector<16x16xf32>
    %5 = tpu.concatenate %2, %4 in 0 : vector<16x16xf32>, vector<16x16xf32> -> vector<32x16xf32>
    %6 = arith.truncf %5 : vector<32x16xf32> to vector<32x16xbf16>
    %c0_4 = arith.constant 0 : index
    %c0_5 = arith.constant 0 : index
    %c0_6 = arith.constant 0 : index
    %7 = vector.load %arg1[%c0_4, %c0_5, %c0_6] : memref<5x16x128xbf16, #tpu.memory_space<vmem>>, vector<1x16x128xbf16>
    %8 = vector.shape_cast %7 : vector<1x16x128xbf16> to vector<16x128xbf16>
    %cst_7 = arith.constant dense<0.000000e+00> : vector<32x128xf32>
    %9 = tpu.matmul %6, %8, %cst_7 {dimension_numbers = #tpu.dot_dimension_numbers<[1], [0], [0], [1], [0, 0, 1, 1], [], []>} : vector<32x16xbf16>, vector<16x128xbf16>, vector<32x128xf32> -> vector<32x128xf32>
    %10 = arith.addf %0, %9 : vector<32x128xf32>
    %c0_8 = arith.constant 0 : index
    %c1_9 = arith.constant 1 : index
    %c0_10 = arith.constant 0 : index
    %11 = vector.load %arg0[%c0_8, %c1_9, %c0_10] : memref<2x20x16xf32, #tpu.memory_space<vmem>>, vector<1x16x16xf32>
    %12 = vector.shape_cast %11 : vector<1x16x16xf32> to vector<16x16xf32>
    %c1_11 = arith.constant 1 : index
    %c1_12 = arith.constant 1 : index
    %c0_13 = arith.constant 0 : index
    %13 = vector.load %arg0[%c1_11, %c1_12, %c0_13] : memref<2x20x16xf32, #tpu.memory_space<vmem>>, vector<1x16x16xf32>
    %14 = vector.shape_cast %13 : vector<1x16x16xf32> to vector<16x16xf32>
    %15 = tpu.concatenate %12, %14 in 0 : vector<16x16xf32>, vector<16x16xf32> -> vector<32x16xf32>
    %16 = arith.truncf %15 : vector<32x16xf32> to vector<32x16xbf16>
    %c1_14 = arith.constant 1 : index
    %c0_15 = arith.constant 0 : index
    %c0_16 = arith.constant 0 : index
    %17 = vector.load %arg1[%c1_14, %c0_15, %c0_16] : memref<5x16x128xbf16, #tpu.memory_space<vmem>>, vector<1x16x128xbf16>
    %18 = vector.shape_cast %17 : vector<1x16x128xbf16> to vector<16x128xbf16>
    %cst_17 = arith.constant dense<0.000000e+00> : vector<32x128xf32>
    %19 = tpu.matmul %16, %18, %cst_17 {dimension_numbers = #tpu.dot_dimension_numbers<[1], [0], [0], [1], [0, 0, 1, 1], [], []>} : vector<32x16xbf16>, vector<16x128xbf16>, vector<32x128xf32> -> vector<32x128xf32>
    %20 = arith.addf %10, %19 : vector<32x128xf32>
    %c0_18 = arith.constant 0 : index
    %c2 = arith.constant 2 : index
    %c0_19 = arith.constant 0 : index
    %21 = vector.load %arg0[%c0_18, %c2, %c0_19] : memref<2x20x16xf32, #tpu.memory_space<vmem>>, vector<1x16x16xf32>
    %22 = vector.shape_cast %21 : vector<1x16x16xf32> to vector<16x16xf32>
    %c1_20 = arith.constant 1 : index
    %c2_21 = arith.constant 2 : index
    %c0_22 = arith.constant 0 : index
    %23 = vector.load %arg0[%c1_20, %c2_21, %c0_22] : memref<2x20x16xf32, #tpu.memory_space<vmem>>, vector<1x16x16xf32>
    %24 = vector.shape_cast %23 : vector<1x16x16xf32> to vector<16x16xf32>
    %25 = tpu.concatenate %22, %24 in 0 : vector<16x16xf32>, vector<16x16xf32> -> vector<32x16xf32>
    %26 = arith.truncf %25 : vector<32x16xf32> to vector<32x16xbf16>
    %c2_23 = arith.constant 2 : index
    %c0_24 = arith.constant 0 : index
    %c0_25 = arith.constant 0 : index
    %27 = vector.load %arg1[%c2_23, %c0_24, %c0_25] : memref<5x16x128xbf16, #tpu.memory_space<vmem>>, vector<1x16x128xbf16>
    %28 = vector.shape_cast %27 : vector<1x16x128xbf16> to vector<16x128xbf16>
    %cst_26 = arith.constant dense<0.000000e+00> : vector<32x128xf32>
    %29 = tpu.matmul %26, %28, %cst_26 {dimension_numbers = #tpu.dot_dimension_numbers<[1], [0], [0], [1], [0, 0, 1, 1], [], []>} : vector<32x16xbf16>, vector<16x128xbf16>, vector<32x128xf32> -> vector<32x128xf32>
    %30 = arith.addf %20, %29 : vector<32x128xf32>
    %c0_27 = arith.constant 0 : index
    %c3 = arith.constant 3 : index
    %c0_28 = arith.constant 0 : index
    %31 = vector.load %arg0[%c0_27, %c3, %c0_28] : memref<2x20x16xf32, #tpu.memory_space<vmem>>, vector<1x16x16xf32>
    %32 = vector.shape_cast %31 : vector<1x16x16xf32> to vector<16x16xf32>
    %c1_29 = arith.constant 1 : index
    %c3_30 = arith.constant 3 : index
    %c0_31 = arith.constant 0 : index
    %33 = vector.load %arg0[%c1_29, %c3_30, %c0_31] : memref<2x20x16xf32, #tpu.memory_space<vmem>>, vector<1x16x16xf32>
    %34 = vector.shape_cast %33 : vector<1x16x16xf32> to vector<16x16xf32>
    %35 = tpu.concatenate %32, %34 in 0 : vector<16x16xf32>, vector<16x16xf32> -> vector<32x16xf32>
    %36 = arith.truncf %35 : vector<32x16xf32> to vector<32x16xbf16>
    %c3_32 = arith.constant 3 : index
    %c0_33 = arith.constant 0 : index
    %c0_34 = arith.constant 0 : index
    %37 = vector.load %arg1[%c3_32, %c0_33, %c0_34] : memref<5x16x128xbf16, #tpu.memory_space<vmem>>, vector<1x16x128xbf16>
    %38 = vector.shape_cast %37 : vector<1x16x128xbf16> to vector<16x128xbf16>
    %cst_35 = arith.constant dense<0.000000e+00> : vector<32x128xf32>
    %39 = tpu.matmul %36, %38, %cst_35 {dimension_numbers = #tpu.dot_dimension_numbers<[1], [0], [0], [1], [0, 0, 1, 1], [], []>} : vector<32x16xbf16>, vector<16x128xbf16>, vector<32x128xf32> -> vector<32x128xf32>
    %40 = arith.addf %30, %39 : vector<32x128xf32>
    %c0_36 = arith.constant 0 : index
    %c4 = arith.constant 4 : index
    %c0_37 = arith.constant 0 : index
    %41 = vector.load %arg0[%c0_36, %c4, %c0_37] : memref<2x20x16xf32, #tpu.memory_space<vmem>>, vector<1x16x16xf32>
    %42 = vector.shape_cast %41 : vector<1x16x16xf32> to vector<16x16xf32>
    %c1_38 = arith.constant 1 : index
    %c4_39 = arith.constant 4 : index
    %c0_40 = arith.constant 0 : index
    %43 = vector.load %arg0[%c1_38, %c4_39, %c0_40] : memref<2x20x16xf32, #tpu.memory_space<vmem>>, vector<1x16x16xf32>
    %44 = vector.shape_cast %43 : vector<1x16x16xf32> to vector<16x16xf32>
    %45 = tpu.concatenate %42, %44 in 0 : vector<16x16xf32>, vector<16x16xf32> -> vector<32x16xf32>
    %46 = arith.truncf %45 : vector<32x16xf32> to vector<32x16xbf16>
    %c4_41 = arith.constant 4 : index
    %c0_42 = arith.constant 0 : index
    %c0_43 = arith.constant 0 : index
    %47 = vector.load %arg1[%c4_41, %c0_42, %c0_43] : memref<5x16x128xbf16, #tpu.memory_space<vmem>>, vector<1x16x128xbf16>
    %48 = vector.shape_cast %47 : vector<1x16x128xbf16> to vector<16x128xbf16>
    %cst_44 = arith.constant dense<0.000000e+00> : vector<32x128xf32>
    %49 = tpu.matmul %46, %48, %cst_44 {dimension_numbers = #tpu.dot_dimension_numbers<[1], [0], [0], [1], [0, 0, 1, 1], [], []>} : vector<32x16xbf16>, vector<16x128xbf16>, vector<32x128xf32> -> vector<32x128xf32>
    %50 = arith.addf %40, %49 : vector<32x128xf32>
    %c0_45 = arith.constant 0 : index
    %c0_46 = arith.constant 0 : index
    %51 = vector.load %arg3[%c0_45, %c0_46] : memref<16x128xf32, #tpu.memory_space<vmem>>, vector<16x128xf32>
    %52 = tpu.concatenate %51, %51 in 0 : vector<16x128xf32>, vector<16x128xf32> -> vector<32x128xf32>
    %c0_47 = arith.constant 0 : index
    %c0_48 = arith.constant 0 : index
    %53 = vector.load %arg2[%c0_47, %c0_48] : memref<1x128xf32, #tpu.memory_space<vmem>>, vector<1x128xf32>
    %54 = vector.broadcast %53 : vector<1x128xf32> to vector<32x128xf32>
    %55 = arith.addf %50, %54 : vector<32x128xf32>
    %cst_49 = arith.constant 0.000000e+00 : f32
    %56 = vector.broadcast %cst_49 : f32 to vector<32x128xf32>
    %57 = arith.maximumf %55, %56 : vector<32x128xf32>
    %58 = arith.mulf %57, %52 : vector<32x128xf32>
    %59 = vector.extract_strided_slice %58 {offsets = [0, 0], sizes = [16, 128], strides = [1, 1]} : vector<32x128xf32> to vector<16x128xf32>
    %cst_50 = arith.constant dense<0xFF800000> : vector<128xf32>
    %60 = vector.multi_reduction <maximumf>, %59, %cst_50 [0] : vector<16x128xf32> to vector<128xf32>
    %61 = vector.shape_cast %60 : vector<128xf32> to vector<1x128xf32>
    %62 = vector.extract_strided_slice %58 {offsets = [16, 0], sizes = [16, 128], strides = [1, 1]} : vector<32x128xf32> to vector<16x128xf32>
    %cst_51 = arith.constant dense<0xFF800000> : vector<128xf32>
    %63 = vector.multi_reduction <maximumf>, %62, %cst_51 [0] : vector<16x128xf32> to vector<128xf32>
    %64 = vector.shape_cast %63 : vector<128xf32> to vector<1x128xf32>
    %65 = tpu.concatenate %61, %64 in 0 : vector<1x128xf32>, vector<1x128xf32> -> vector<2x128xf32>
    %c0_52 = arith.constant 0 : index
    %c0_53 = arith.constant 0 : index
    %66 = vector.load %arg6[%c0_52, %c0_53] : memref<2x256xf32, #tpu.memory_space<vmem>>, vector<2x256xf32>
    %67 = tpu.concatenate %65, %66 in 1 : vector<2x128xf32>, vector<2x256xf32> -> vector<2x384xf32>
    %68 = arith.truncf %67 : vector<2x384xf32> to vector<2x384xbf16>
    %c0_54 = arith.constant 0 : index
    %c0_55 = arith.constant 0 : index
    %69 = vector.load %arg4[%c0_54, %c0_55] : memref<384x1024xbf16, #tpu.memory_space<vmem>>, vector<384x1024xbf16>
    %cst_56 = arith.constant dense<0.000000e+00> : vector<2x1024xf32>
    %70 = tpu.matmul %68, %69, %cst_56 {dimension_numbers = #tpu.dot_dimension_numbers<[1], [0], [0], [1], [0, 0, 1, 1], [], []>} : vector<2x384xbf16>, vector<384x1024xbf16>, vector<2x1024xf32> -> vector<2x1024xf32>
    %c0_57 = arith.constant 0 : index
    %c0_58 = arith.constant 0 : index
    %71 = vector.load %arg5[%c0_57, %c0_58] : memref<1x1024xf32, #tpu.memory_space<vmem>>, vector<1x1024xf32>
    %72 = vector.broadcast %71 : vector<1x1024xf32> to vector<2x1024xf32>
    %73 = arith.addf %70, %72 : vector<2x1024xf32>
    %74 = vector.extract_strided_slice %73 {offsets = [0, 0], sizes = [2, 256], strides = [1, 1]} : vector<2x1024xf32> to vector<2x256xf32>
    %75 = arith.negf %74 : vector<2x256xf32>
    %76 = math.exp %75 : vector<2x256xf32>
    %cst_59 = arith.constant 1.000000e+00 : f32
    %77 = vector.broadcast %cst_59 : f32 to vector<2x256xf32>
    %78 = arith.addf %77, %76 : vector<2x256xf32>
    %79 = arith.divf %77, %78 : vector<2x256xf32>
    %80 = vector.extract_strided_slice %73 {offsets = [0, 256], sizes = [2, 256], strides = [1, 1]} : vector<2x1024xf32> to vector<2x256xf32>
    %81 = arith.negf %80 : vector<2x256xf32>
    %82 = math.exp %81 : vector<2x256xf32>
    %cst_60 = arith.constant 1.000000e+00 : f32
    %83 = vector.broadcast %cst_60 : f32 to vector<2x256xf32>
    %84 = arith.addf %83, %82 : vector<2x256xf32>
    %85 = arith.divf %83, %84 : vector<2x256xf32>
    %86 = vector.extract_strided_slice %73 {offsets = [0, 512], sizes = [2, 256], strides = [1, 1]} : vector<2x1024xf32> to vector<2x256xf32>
    %87 = math.tanh %86 : vector<2x256xf32>
    %88 = vector.extract_strided_slice %73 {offsets = [0, 768], sizes = [2, 256], strides = [1, 1]} : vector<2x1024xf32> to vector<2x256xf32>
    %89 = arith.negf %88 : vector<2x256xf32>
    %90 = math.exp %89 : vector<2x256xf32>
    %cst_61 = arith.constant 1.000000e+00 : f32
    %91 = vector.broadcast %cst_61 : f32 to vector<2x256xf32>
    %92 = arith.addf %91, %90 : vector<2x256xf32>
    %93 = arith.divf %91, %92 : vector<2x256xf32>
    %c0_62 = arith.constant 0 : index
    %c0_63 = arith.constant 0 : index
    %94 = vector.load %arg7[%c0_62, %c0_63] : memref<2x256xf32, #tpu.memory_space<vmem>>, vector<2x256xf32>
    %95 = arith.mulf %85, %94 : vector<2x256xf32>
    %96 = arith.mulf %79, %87 : vector<2x256xf32>
    %97 = arith.addf %95, %96 : vector<2x256xf32>
    %98 = math.tanh %97 : vector<2x256xf32>
    %99 = arith.mulf %93, %98 : vector<2x256xf32>
    %100 = arith.truncf %99 : vector<2x256xf32> to vector<2x256xbf16>
    %c0_64 = arith.constant 0 : index
    %c0_65 = arith.constant 0 : index
    %101 = vector.load %arg8[%c0_64, %c0_65] : memref<256x128xbf16, #tpu.memory_space<vmem>>, vector<256x128xbf16>
    %cst_66 = arith.constant dense<0.000000e+00> : vector<2x128xf32>
    %102 = tpu.matmul %100, %101, %cst_66 {dimension_numbers = #tpu.dot_dimension_numbers<[1], [0], [0], [1], [0, 0, 1, 1], [], []>} : vector<2x256xbf16>, vector<256x128xbf16>, vector<2x128xf32> -> vector<2x128xf32>
    %c0_67 = arith.constant 0 : index
    %c0_68 = arith.constant 0 : index
    %103 = vector.load %arg9[%c0_67, %c0_68] : memref<1x128xf32, #tpu.memory_space<vmem>>, vector<1x128xf32>
    %104 = vector.broadcast %103 : vector<1x128xf32> to vector<2x128xf32>
    %105 = arith.addf %102, %104 : vector<2x128xf32>
    %c0_69 = arith.constant 0 : index
    %c0_70 = arith.constant 0 : index
    %106 = vector.load %arg10[%c0_69, %c0_70] : memref<2x128xf32, #tpu.memory_space<vmem>>, vector<2x128xf32>
    tpu.vector_store %arg10[%c0_69, %c0_70], %105 {strides = array<i32>} : memref<2x128xf32, #tpu.memory_space<vmem>>, vector<2x128xf32>,
    %c0_71 = arith.constant 0 : index
    %c0_72 = arith.constant 0 : index
    %107 = vector.load %arg11[%c0_71, %c0_72] : memref<2x256xf32, #tpu.memory_space<vmem>>, vector<2x256xf32>
    tpu.vector_store %arg11[%c0_71, %c0_72], %99 {strides = array<i32>} : memref<2x256xf32, #tpu.memory_space<vmem>>, vector<2x256xf32>,
    %c0_73 = arith.constant 0 : index
    %c0_74 = arith.constant 0 : index
    %108 = vector.load %arg12[%c0_73, %c0_74] : memref<2x256xf32, #tpu.memory_space<vmem>>, vector<2x256xf32>
    tpu.vector_store %arg12[%c0_73, %c0_74], %97 {strides = array<i32>} : memref<2x256xf32, #tpu.memory_space<vmem>>, vector<2x256xf32>,
    return
  }
}

</mosaic_0001>

<llo_original>
// kernel: _forward_impl.1
$region0: #{_forward_impl.1}
  #allocation0 [shape = 'u32[]', space=smem, size = 0x4, offset = 0x4, fixed_abs, tag = 'smem constant byte address 0x4 - core index']
  #allocation1 [shape = 'u32[72,128]{1,0:T(1,128)}', space=vmem, size = 0x9000, scoped, tag = 'internal scratch']
  %s0 = inlined_call_operand.vmem [shape: f32[2,20,16], index: 0, kind: input, shape index: {}]
  %s1 = inlined_call_operand.vmem [shape: bf16[5,16,128], index: 1, kind: input, shape index: {}]
  %s2 = inlined_call_operand.vmem [shape: f32[1,128], index: 2, kind: input, shape index: {}]
  %s3 = inlined_call_operand.vmem [shape: f32[16,128], index: 3, kind: input, shape index: {}]
  %s4 = inlined_call_operand.hbm [shape: bf16[384,1024], index: 4, kind: input, shape index: {}]
  %s5 = inlined_call_operand.vmem [shape: f32[1,1024], index: 5, kind: input, shape index: {}]
  %s6 = inlined_call_operand.vmem [shape: f32[2,256], index: 6, kind: input, shape index: {}, may-alias: {6,11}]
  %s7 = inlined_call_operand.vmem [shape: f32[2,256], index: 7, kind: input, shape index: {}, may-alias: {7,12}]
  %s8 = inlined_call_operand.hbm [shape: bf16[256,128], index: 8, kind: input, shape index: {}]
  %s9 = inlined_call_operand.vmem [shape: f32[1,128], index: 9, kind: input, shape index: {}]
  %s10 = inlined_call_operand.vmem [shape: f32[2,128], index: 10, kind: output, shape index: {0}]
  %s11 = inlined_call_operand.vmem [shape: f32[2,256], index: 11, kind: output, shape index: {1}, may-alias: {6,11}]
  %s12 = inlined_call_operand.vmem [shape: f32[2,256], index: 12, kind: output, shape index: {2}, may-alias: {7,12}]
  %13 = xla_tuple %s10, %s11, %s12
  %s14 = sld [smem:[#allocation0]]
  $region74: #{_forward_impl.1} parent=0
    _
  %s16 = ssub.s32 1, %s14
  %s17 = scalar_select 0, %s16, %s14
  $region1: #{_forward_impl.1} parent=0
    #allocation2 [shape = 'u8[786432]{0}', space=vmem, size = 0xc0000, scoped, tag = 'input window, operand 4, single buffered']
    #allocation3 [shape = 's32[1]{0}', space=sflag, size = 0x4, scoped, tag = 'scoped memory for _forward_impl.1']
    #allocation4 [shape = 'u8[65536]{0}', space=vmem, size = 0x10000, scoped, tag = 'input window, operand 8, single buffered']
    #allocation5 [shape = 's32[1]{0}', space=sflag, size = 0x4, scoped, tag = 'scoped memory for _forward_impl.1']
    %18 = vsyncpa [#allocation3], 0
    %19 = vsyncpa [#allocation5], 0
    // Predicated region
    $region2: #{_forward_impl.1} parent=1 // pred_check
      _
    $region3: #{_forward_impl.1} parent=1 // pred_check_branch
      %21 = sbr.rel (0) target = $region5
    $region4: #{_forward_impl.1} parent=1 // pred_region
      _
    $region5: #{_forward_impl.1} parent=1 // pred_fallthru
      _
    // Predicated region
    $region6: #{_forward_impl.1} parent=1 // pred_check
      _
    $region7: #{_forward_impl.1} parent=1 // pred_check_branch
      %23 = sbr.rel (0) target = $region9
    $region8: #{_forward_impl.1} parent=1 // pred_region
      _
    $region9: #{_forward_impl.1} parent=1 // pred_fallthru
      _
    // Predicated region
    $region10: #{_forward_impl.1} parent=1 // pred_check
      _
    $region11: #{_forward_impl.1} parent=1 // pred_check_branch
      %25 = sbr.rel (0) target = $region13
    $region12: #{_forward_impl.1} parent=1 // pred_region
      _
    $region13: #{_forward_impl.1} parent=1 // pred_fallthru
      _
    // Predicated region
    $region14: #{_forward_impl.1} parent=1 // pred_check
      _
    $region15: #{_forward_impl.1} parent=1 // pred_check_branch
      %27 = sbr.rel (0) target = $region17
    $region16: #{_forward_impl.1} parent=1 // pred_region
      _
    $region17: #{_forward_impl.1} parent=1 // pred_fallthru
      _
    // Predicated region
    $region18: #{_forward_impl.1} parent=1 // pred_check
      _
    $region19: #{_forward_impl.1} parent=1 // pred_check_branch
      %29 = sbr.rel (0) target = $region21
    $region20: #{_forward_impl.1} parent=1 // pred_region
      %31 = vsyncadd [#allocation3], 0
      %s32 = sshll.u32 %s4, 4
      %s33 = int_to_ptr.hbm [resolvable:$true] %s32
      %s34 = sshll.u32 [#allocation2], 4
      %s35 = int_to_ptr.vmem [resolvable:$true] %s34
      %40 = dma.hbm_to_vmem [thread:$0]  %s33, 24576, %s35, [#allocation3], 512, 512, 32
    $region21: #{_forward_impl.1} parent=1 // pred_fallthru
      _
    // Predicated region
    $region22: #{_forward_impl.1} parent=1 // pred_check
      _
    $region23: #{_forward_impl.1} parent=1 // pred_check_branch
      %42 = sbr.rel (0) target = $region25
    $region24: #{_forward_impl.1} parent=1 // pred_region
      _
    $region25: #{_forward_impl.1} parent=1 // pred_fallthru
      _
    // Predicated region
    $region26: #{_forward_impl.1} parent=1 // pred_check
      _
    $region27: #{_forward_impl.1} parent=1 // pred_check_branch
      %44 = sbr.rel (0) target = $region29
    $region28: #{_forward_impl.1} parent=1 // pred_region
      _
    $region29: #{_forward_impl.1} parent=1 // pred_fallthru
      _
    // Predicated region
    $region30: #{_forward_impl.1} parent=1 // pred_check
      _
    $region31: #{_forward_impl.1} parent=1 // pred_check_branch
      %46 = sbr.rel (0) target = $region33
    $region32: #{_forward_impl.1} parent=1 // pred_region
      _
    $region33: #{_forward_impl.1} parent=1 // pred_fallthru
      _
    // Predicated region
    $region34: #{_forward_impl.1} parent=1 // pred_check
      _
    $region35: #{_forward_impl.1} parent=1 // pred_check_branch
      %48 = sbr.rel (0) target = $region37
    $region36: #{_forward_impl.1} parent=1 // pred_region
      %50 = vsyncadd [#allocation5], 0
      %s51 = sshll.u32 %s8, 4
      %s52 = int_to_ptr.hbm [resolvable:$true] %s51
      %s53 = sshll.u32 [#allocation4], 4
      %s54 = int_to_ptr.vmem [resolvable:$true] %s53
      %59 = dma.hbm_to_vmem [thread:$0]  %s52, 2048, %s54, [#allocation5], 64, 64, 4
    $region37: #{_forward_impl.1} parent=1 // pred_fallthru
      _
    // Predicated region
    $region38: #{_forward_impl.1} parent=1 // pred_check
      _
    $region39: #{_forward_impl.1} parent=1 // pred_check_branch
      %61 = sbr.rel (0) target = $region41
    $region40: #{_forward_impl.1} parent=1 // pred_region
      _
    $region41: #{_forward_impl.1} parent=1 // pred_fallthru
      _
    // Predicated region
    $region42: #{_forward_impl.1} parent=1 // pred_check
      _
    $region43: #{_forward_impl.1} parent=1 // pred_check_branch
      %63 = sbr.rel (0) target = $region45
    $region44: #{_forward_impl.1} parent=1 // pred_region
      %65 = dma.done [#allocation3], 24576
    $region45: #{_forward_impl.1} parent=1 // pred_fallthru
      _
    // Predicated region
    $region46: #{_forward_impl.1} parent=1 // pred_check
      _
    $region47: #{_forward_impl.1} parent=1 // pred_check_branch
      %67 = sbr.rel (0) target = $region49
    $region48: #{_forward_impl.1} parent=1 // pred_region
      %69 = dma.done [#allocation5], 2048
    $region49: #{_forward_impl.1} parent=1 // pred_fallthru
      _
    %v71 = vld [vmem:[%s0] sm:$0xff]
    %v72 = vld [vmem:[%s0 + $0x8] sm:$0xff]
    %s73 = scalar_lea.vmem %s0, 24
    %v74 = vld [vmem:[%s73] sm:$0xff]
    %v75 = vld [vmem:[%s73 + $0x8] sm:$0xff]
    %v76 = vpack.c.bf16 %v72, %v71
    %v77 = vpack.c.bf16 %v75, %v74
    %v78 = vld [vmem:[%s1] sm:$0xf]
    %v79 = vld [vmem:[%s1 + $0x4] sm:$0xf]
    %v80 = vld [vmem:[%s0 + $0x1] sm:$0xff]
    %v81 = vld [vmem:[%s0 + $0x9] sm:$0xff]
    %v82 = vld [vmem:[%s73 + $0x1] sm:$0xff]
    %v83 = vld [vmem:[%s73 + $0x9] sm:$0xff]
    %v84 = vpack.c.bf16 %v81, %v80
    %v85 = vpack.c.bf16 %v83, %v82
    %s86 = scalar_lea.vmem %s1, 8
    %v87 = vld [vmem:[%s86] sm:$0xf]
    %v88 = vld [vmem:[%s86 + $0x4] sm:$0xf]
    %v91 = vunpack.c.l.b16 %v87
    %v92 = vunpack.c.l.b16 %v88
    %v93 = vpack.c.b16 %v92, %v91
    %vm95 = vcmask 130048
    %v97 = vsel %vm95, %v84, 0
    %v100 = vsel %vm95, %v85, 0
    %102 = vmatpush.bf16.msra.mxu0 0
    %103 = vmatpush.bf16.msra.mxu0 0
    %104 = vmatpush.bf16.msra.mxu0 0
    %105 = vmatpush.bf16.msra.mxu0 0
    %106 = vmatpush.bf16.msra.mxu0 0
    %107 = vmatpush.bf16.msra.mxu0 0
    %108 = vmatpush.bf16.msra.mxu0 0
    %109 = vmatpush.bf16.msra.mxu0 %v93
    %110 = vmatmul.bf16.gmra.mxu0 %v97
    %v111 = vpop.f32.mrf.mxu0
    %v112 = vadd.f32 0.0, %v111
    %v113 = vpop.f32.mrf.mxu0
    %v114 = vadd.f32 0.0, %v113
    %115 = vmatmul.bf16.gmra.mxu0 %v100
    %v116 = vpop.f32.mrf.mxu0
    %v117 = vadd.f32 0.0, %v116
    %v118 = vpop.f32.mrf.mxu0
    %v119 = vadd.f32 0.0, %v118
    %120 = vdwg.mxu0
    %v123 = vunpack.c.l.b16 %v78
    %v124 = vunpack.c.l.b16 %v79
    %v125 = vpack.c.b16 %v124, %v123
    %v128 = vsel %vm95, %v76, 0
    %v131 = vsel %vm95, %v77, 0
    %133 = vmatpush.bf16.msra.mxu0 0
    %134 = vmatpush.bf16.msra.mxu0 0
    %135 = vmatpush.bf16.msra.mxu0 0
    %136 = vmatpush.bf16.msra.mxu0 0
    %137 = vmatpush.bf16.msra.mxu0 0
    %138 = vmatpush.bf16.msra.mxu0 0
    %139 = vmatpush.bf16.msra.mxu0 0
    %140 = vmatpush.bf16.msra.mxu0 %v125
    %141 = vmatmul.bf16.gmra.mxu0 %v128
    %v142 = vpop.f32.mrf.mxu0
    %v143 = vadd.f32 %v112, %v142
    %v144 = vpop.f32.mrf.mxu0
    %v145 = vadd.f32 %v114, %v144
    %146 = vmatmul.bf16.gmra.mxu0 %v131
    %v147 = vpop.f32.mrf.mxu0
    %v148 = vadd.f32 %v117, %v147
    %v149 = vpop.f32.mrf.mxu0
    %v150 = vadd.f32 %v119, %v149
    %151 = vdwg.mxu0
    %v152 = vld [vmem:[%s0 + $0x2] sm:$0xff]
    %v153 = vld [vmem:[%s0 + $0xa] sm:$0xff]
    %v154 = vld [vmem:[%s73 + $0x2] sm:$0xff]
    %v155 = vld [vmem:[%s73 + $0xa] sm:$0xff]
    %v156 = vpack.c.bf16 %v153, %v152
    %v157 = vpack.c.bf16 %v155, %v154
    %s158 = scalar_lea.vmem %s1, 16
    %v159 = vld [vmem:[%s158] sm:$0xf]
    %v160 = vld [vmem:[%s158 + $0x4] sm:$0xf]
    %v163 = vunpack.c.l.b16 %v159
    %v164 = vunpack.c.l.b16 %v160
    %v165 = vpack.c.b16 %v164, %v163
    %v168 = vsel %vm95, %v156, 0
    %v171 = vsel %vm95, %v157, 0
    %173 = vmatpush.bf16.msra.mxu0 0
    %174 = vmatpush.bf16.msra.mxu0 0
    %175 = vmatpush.bf16.msra.mxu0 0
    %176 = vmatpush.bf16.msra.mxu0 0
    %177 = vmatpush.bf16.msra.mxu0 0
    %178 = vmatpush.bf16.msra.mxu0 0
    %179 = vmatpush.bf16.msra.mxu0 0
    %180 = vmatpush.bf16.msra.mxu0 %v165
    %181 = vmatmul.bf16.gmra.mxu0 %v168
    %v182 = vpop.f32.mrf.mxu0
    %v183 = vadd.f32 0.0, %v182
    %v184 = vpop.f32.mrf.mxu0
    %v185 = vadd.f32 0.0, %v184
    %186 = vmatmul.bf16.gmra.mxu0 %v171
    %v187 = vpop.f32.mrf.mxu0
    %v188 = vadd.f32 0.0, %v187
    %v189 = vpop.f32.mrf.mxu0
    %v190 = vadd.f32 0.0, %v189
    %191 = vdwg.mxu0
    %v192 = vadd.f32 %v143, %v183
    %v193 = vadd.f32 %v145, %v185
    %v194 = vadd.f32 %v148, %v188
    %v195 = vadd.f32 %v150, %v190
    %v196 = vld [vmem:[%s0 + $0x3] sm:$0xff]
    %v197 = vld [vmem:[%s0 + $0xb] sm:$0xff]
    %v198 = vld [vmem:[%s73 + $0x3] sm:$0xff]
    %v199 = vld [vmem:[%s73 + $0xb] sm:$0xff]
    %v200 = vpack.c.bf16 %v197, %v196
    %v201 = vpack.c.bf16 %v199, %v198
    %s202 = scalar_lea.vmem %s1, 24
    %v203 = vld [vmem:[%s202] sm:$0xf]
    %v204 = vld [vmem:[%s202 + $0x4] sm:$0xf]
    %v207 = vunpack.c.l.b16 %v203
    %v208 = vunpack.c.l.b16 %v204
    %v209 = vpack.c.b16 %v208, %v207
    %v212 = vsel %vm95, %v200, 0
    %v215 = vsel %vm95, %v201, 0
    %217 = vmatpush.bf16.msra.mxu0 0
    %218 = vmatpush.bf16.msra.mxu0 0
    %219 = vmatpush.bf16.msra.mxu0 0
    %220 = vmatpush.bf16.msra.mxu0 0
    %221 = vmatpush.bf16.msra.mxu0 0
    %222 = vmatpush.bf16.msra.mxu0 0
    %223 = vmatpush.bf16.msra.mxu0 0
    %224 = vmatpush.bf16.msra.mxu0 %v209
    %225 = vmatmul.bf16.gmra.mxu0 %v212
    %v226 = vpop.f32.mrf.mxu0
    %v227 = vadd.f32 0.0, %v226
    %v228 = vpop.f32.mrf.mxu0
    %v229 = vadd.f32 0.0, %v228
    %230 = vmatmul.bf16.gmra.mxu0 %v215
    %v231 = vpop.f32.mrf.mxu0
    %v232 = vadd.f32 0.0, %v231
    %v233 = vpop.f32.mrf.mxu0
    %v234 = vadd.f32 0.0, %v233
    %235 = vdwg.mxu0
    %v236 = vadd.f32 %v192, %v227
    %v237 = vadd.f32 %v193, %v229
    %v238 = vadd.f32 %v194, %v232
    %v239 = vadd.f32 %v195, %v234
    %v240 = vld [vmem:[%s0 + $0x4] sm:$0xff]
    %v241 = vld [vmem:[%s0 + $0xc] sm:$0xff]
    %v242 = vld [vmem:[%s73 + $0x4] sm:$0xff]
    %v243 = vld [vmem:[%s73 + $0xc] sm:$0xff]
    %v244 = vpack.c.bf16 %v241, %v240
    %v245 = vpack.c.bf16 %v243, %v242
    %s246 = scalar_lea.vmem %s1, 32
    %v247 = vld [vmem:[%s246] sm:$0xf]
    %v248 = vld [vmem:[%s246 + $0x4] sm:$0xf]
    %v251 = vunpack.c.l.b16 %v247
    %v252 = vunpack.c.l.b16 %v248
    %v253 = vpack.c.b16 %v252, %v251
    %v256 = vsel %vm95, %v244, 0
    %v259 = vsel %vm95, %v245, 0
    %261 = vmatpush.bf16.msra.mxu0 0
    %262 = vmatpush.bf16.msra.mxu0 0
    %263 = vmatpush.bf16.msra.mxu0 0
    %264 = vmatpush.bf16.msra.mxu0 0
    %265 = vmatpush.bf16.msra.mxu0 0
    %266 = vmatpush.bf16.msra.mxu0 0
    %267 = vmatpush.bf16.msra.mxu0 0
    %268 = vmatpush.bf16.msra.mxu0 %v253
    %269 = vmatmul.bf16.gmra.mxu0 %v256
    %v270 = vpop.f32.mrf.mxu0
    %v271 = vadd.f32 0.0, %v270
    %v272 = vpop.f32.mrf.mxu0
    %v273 = vadd.f32 0.0, %v272
    %274 = vmatmul.bf16.gmra.mxu0 %v259
    %v275 = vpop.f32.mrf.mxu0
    %v276 = vadd.f32 0.0, %v275
    %v277 = vpop.f32.mrf.mxu0
    %v278 = vadd.f32 0.0, %v277
    %279 = vdwg.mxu0
    %v280 = vadd.f32 %v236, %v271
    %v281 = vadd.f32 %v237, %v273
    %v282 = vadd.f32 %v238, %v276
    %v283 = vadd.f32 %v239, %v278
    %v284 = vld [vmem:[%s3] sm:$0xff]
    %v285 = vld [vmem:[%s3 + $0x8] sm:$0xff]
    %v286 = vld [vmem:[%s2] sm:$0x1]
    %v288 = vperm.slane %v286, 0
    %v290 = vadd.f32 %v280, %v288
    %v291 = vadd.f32 %v281, %v288
    %v292 = vadd.f32 %v282, %v288
    %v293 = vadd.f32 %v283, %v288
    %v294 = vmax.f32 %v290, 0.0
    %v295 = vmax.f32 %v291, 0.0
    %v296 = vmax.f32 %v292, 0.0
    %v297 = vmax.f32 %v293, 0.0
    %v298 = vmul.f32 %v294, %v284
    %v299 = vmul.f32 %v295, %v285
    %v300 = vmul.f32 %v296, %v284
    %v301 = vmul.f32 %v297, %v285
    %v302 = vmax.f32 %v298, %v299
    %v303 = vrot.slane %v302, 4
    %v304 = vmax.f32 %v302, %v303
    %v305 = vrot.slane %v304, 2
    %v306 = vmax.f32 %v304, %v305
    %v307 = vrot.slane %v306, 1
    %v308 = vmax.f32 %v306, %v307
    %v309 = vmax.f32 %v300, %v301
    %v310 = vrot.slane %v309, 4
    %v311 = vmax.f32 %v309, %v310
    %v312 = vrot.slane %v311, 2
    %v313 = vmax.f32 %v311, %v312
    %v314 = vrot.slane %v313, 1
    %v315 = vmax.f32 %v313, %v314
    %vm316 = vcmask 1040384
    %v317 = vsel %vm316, %v308, %v315
    %v318 = vld [vmem:[%s6] sm:$0xf]
    %320 = vst [vmem:[#allocation1] ss:$4 sm:$0xff] %v318
    %v321 = vld.sshfl [vmem:[#allocation1] sm:$0xff pattern:$0x73625140]
    %v322 = vld.sshfl [vmem:[#allocation1 + $0x8] sm:$0xff pattern:$0x73625140]
    %v325 = vpack.c.bf16 %v317, %v317
    %v326 = vpack.c.bf16 %v321, %v321
    %v327 = vpack.c.bf16 %v322, %v322
    %v328 = vld [vmem:[#allocation2] sm:$0xff]
    %v329 = vld [vmem:[#allocation2 + $0x8] sm:$0xff]
    %v330 = vld [vmem:[#allocation2 + $0x10] sm:$0xff]
    %v331 = vld [vmem:[#allocation2 + $0x18] sm:$0xff]
    %v332 = vld [vmem:[#allocation2 + $0x20] sm:$0xff]
    %v333 = vld [vmem:[#allocation2 + $0x28] sm:$0xff]
    %v334 = vld [vmem:[#allocation2 + $0x30] sm:$0xff]
    %v335 = vld [vmem:[#allocation2 + $0x38] sm:$0xff]
    %v336 = vld [vmem:[#allocation2 + $0x40] sm:$0xff]
    %v337 = vld [vmem:[#allocation2 + $0x48] sm:$0xff]
    %v338 = vld [vmem:[#allocation2 + $0x50] sm:$0xff]
    %v339 = vld [vmem:[#allocation2 + $0x58] sm:$0xff]
    %v340 = vld [vmem:[#allocation2 + $0x60] sm:$0xff]
    %v341 = vld [vmem:[#allocation2 + $0x68] sm:$0xff]
    %v342 = vld [vmem:[#allocation2 + $0x70] sm:$0xff]
    %v343 = vld [vmem:[#allocation2 + $0x78] sm:$0xff]
    %v344 = vld [vmem:[#allocation2 + $0x80] sm:$0xff]
    %v345 = vld [vmem:[#allocation2 + $0x88] sm:$0xff]
    %v346 = vld [vmem:[#allocation2 + $0x90] sm:$0xff]
    %v347 = vld [vmem:[#allocation2 + $0x98] sm:$0xff]
    %v348 = vld [vmem:[#allocation2 + $0xa0] sm:$0xff]
    %v349 = vld [vmem:[#allocation2 + $0xa8] sm:$0xff]
    %v350 = vld [vmem:[#allocation2 + $0xb0] sm:$0xff]
    %v351 = vld [vmem:[#allocation2 + $0xb8] sm:$0xff]
    %v352 = vld [vmem:[#allocation2 + $0xc0] sm:$0xff]
    %v353 = vld [vmem:[#allocation2 + $0xc8] sm:$0xff]
    %v354 = vld [vmem:[#allocation2 + $0xd0] sm:$0xff]
    %v355 = vld [vmem:[#allocation2 + $0xd8] sm:$0xff]
    %v356 = vld [vmem:[#allocation2 + $0xe0] sm:$0xff]
    %v357 = vld [vmem:[#allocation2 + $0xe8] sm:$0xff]
    %v358 = vld [vmem:[#allocation2 + $0xf0] sm:$0xff]
    %v359 = vld [vmem:[#allocation2 + $0xf8] sm:$0xff]
    %v360 = vld [vmem:[#allocation2 + $0x100] sm:$0xff]
    %v361 = vld [vmem:[#allocation2 + $0x108] sm:$0xff]
    %v362 = vld [vmem:[#allocation2 + $0x110] sm:$0xff]
    %v363 = vld [vmem:[#allocation2 + $0x118] sm:$0xff]
    %v364 = vld [vmem:[#allocation2 + $0x120] sm:$0xff]
    %v365 = vld [vmem:[#allocation2 + $0x128] sm:$0xff]
    %v366 = vld [vmem:[#allocation2 + $0x130] sm:$0xff]
    %v367 = vld [vmem:[#allocation2 + $0x138] sm:$0xff]
    %v368 = vld [vmem:[#allocation2 + $0x140] sm:$0xff]
    %v369 = vld [vmem:[#allocation2 + $0x148] sm:$0xff]
    %v370 = vld [vmem:[#allocation2 + $0x150] sm:$0xff]
    %v371 = vld [vmem:[#allocation2 + $0x158] sm:$0xff]
    %v372 = vld [vmem:[#allocation2 + $0x160] sm:$0xff]
    %v373 = vld [vmem:[#allocation2 + $0x168] sm:$0xff]
    %v374 = vld [vmem:[#allocation2 + $0x170] sm:$0xff]
    %v375 = vld [vmem:[#allocation2 + $0x178] sm:$0xff]
    %v376 = vld [vmem:[#allocation2 + $0x180] sm:$0xff]
    %v377 = vld [vmem:[#allocation2 + $0x188] sm:$0xff]
    %v378 = vld [vmem:[#allocation2 + $0x190] sm:$0xff]
    %v379 = vld [vmem:[#allocation2 + $0x198] sm:$0xff]
    %v380 = vld [vmem:[#allocation2 + $0x1a0] sm:$0xff]
    %v381 = vld [vmem:[#allocation2 + $0x1a8] sm:$0xff]
    %v382 = vld [vmem:[#allocation2 + $0x1b0] sm:$0xff]
    %v383 = vld [vmem:[#allocation2 + $0x1b8] sm:$0xff]
    %v384 = vld [vmem:[#allocation2 + $0x1c0] sm:$0xff]
    %v385 = vld [vmem:[#allocation2 + $0x1c8] sm:$0xff]
    %v386 = vld [vmem:[#allocation2 + $0x1d0] sm:$0xff]
    %v387 = vld [vmem:[#allocation2 + $0x1d8] sm:$0xff]
    %v388 = vld [vmem:[#allocation2 + $0x1e0] sm:$0xff]
    %v389 = vld [vmem:[#allocation2 + $0x1e8] sm:$0xff]
    %v390 = vld [vmem:[#allocation2 + $0x1f0] sm:$0xff]
    %v391 = vld [vmem:[#allocation2 + $0x1f8] sm:$0xff]
    %v392 = vld [vmem:[#allocation2 + $0x200] sm:$0xff]
    %v393 = vld [vmem:[#allocation2 + $0x208] sm:$0xff]
    %v394 = vld [vmem:[#allocation2 + $0x210] sm:$0xff]
    %v395 = vld [vmem:[#allocation2 + $0x218] sm:$0xff]
    %v396 = vld [vmem:[#allocation2 + $0x220] sm:$0xff]
    %v397 = vld [vmem:[#allocation2 + $0x228] sm:$0xff]
    %v398 = vld [vmem:[#allocation2 + $0x230] sm:$0xff]
    %v399 = vld [vmem:[#allocation2 + $0x238] sm:$0xff]
    %v400 = vld [vmem:[#allocation2 + $0x240] sm:$0xff]
    %v401 = vld [vmem:[#allocation2 + $0x248] sm:$0xff]
    %v402 = vld [vmem:[#allocation2 + $0x250] sm:$0xff]
    %v403 = vld [vmem:[#allocation2 + $0x258] sm:$0xff]
    %v404 = vld [vmem:[#allocation2 + $0x260] sm:$0xff]
    %v405 = vld [vmem:[#allocation2 + $0x268] sm:$0xff]
    %v406 = vld [vmem:[#allocation2 + $0x270] sm:$0xff]
    %v407 = vld [vmem:[#allocation2 + $0x278] sm:$0xff]
    %v408 = vld [vmem:[#allocation2 + $0x280] sm:$0xff]
    %v409 = vld [vmem:[#allocation2 + $0x288] sm:$0xff]
    %v410 = vld [vmem:[#allocation2 + $0x290] sm:$0xff]
    %v411 = vld [vmem:[#allocation2 + $0x298] sm:$0xff]
    %v412 = vld [vmem:[#allocation2 + $0x2a0] sm:$0xff]
    %v413 = vld [vmem:[#allocation2 + $0x2a8] sm:$0xff]
    %v414 = vld [vmem:[#allocation2 + $0x2b0] sm:$0xff]
    %v415 = vld [vmem:[#allocation2 + $0x2b8] sm:$0xff]
    %v416 = vld [vmem:[#allocation2 + $0x2c0] sm:$0xff]
    %v417 = vld [vmem:[#allocation2 + $0x2c8] sm:$0xff]
    %v418 = vld [vmem:[#allocation2 + $0x2d0] sm:$0xff]
    %v419 = vld [vmem:[#allocation2 + $0x2d8] sm:$0xff]
    %v420 = vld [vmem:[#allocation2 + $0x2e0] sm:$0xff]
    %v421 = vld [vmem:[#allocation2 + $0x2e8] sm:$0xff]
    %v422 = vld [vmem:[#allocation2 + $0x2f0] sm:$0xff]
    %v423 = vld [vmem:[#allocation2 + $0x2f8] sm:$0xff]
    %v424 = vld [vmem:[#allocation2 + $0x300] sm:$0xff]
    %v425 = vld [vmem:[#allocation2 + $0x308] sm:$0xff]
    %v426 = vld [vmem:[#allocation2 + $0x310] sm:$0xff]
    %v427 = vld [vmem:[#allocation2 + $0x318] sm:$0xff]
    %v428 = vld [vmem:[#allocation2 + $0x320] sm:$0xff]
    %v429 = vld [vmem:[#allocation2 + $0x328] sm:$0xff]
    %v430 = vld [vmem:[#allocation2 + $0x330] sm:$0xff]
    %v431 = vld [vmem:[#allocation2 + $0x338] sm:$0xff]
    %v432 = vld [vmem:[#allocation2 + $0x340] sm:$0xff]
    %v433 = vld [vmem:[#allocation2 + $0x348] sm:$0xff]
    %v434 = vld [vmem:[#allocation2 + $0x350] sm:$0xff]
    %v435 = vld [vmem:[#allocation2 + $0x358] sm:$0xff]
    %v436 = vld [vmem:[#allocation2 + $0x360] sm:$0xff]
    %v437 = vld [vmem:[#allocation2 + $0x368] sm:$0xff]
    %v438 = vld [vmem:[#allocation2 + $0x370] sm:$0xff]
    %v439 = vld [vmem:[#allocation2 + $0x378] sm:$0xff]
    %v440 = vld [vmem:[#allocation2 + $0x380] sm:$0xff]
    %v441 = vld [vmem:[#allocation2 + $0x388] sm:$0xff]
    %v442 = vld [vmem:[#allocation2 + $0x390] sm:$0xff]
    %v443 = vld [vmem:[#allocation2 + $0x398] sm:$0xff]
    %v444 = vld [vmem:[#allocation2 + $0x3a0] sm:$0xff]
    %v445 = vld [vmem:[#allocation2 + $0x3a8] sm:$0xff]
    %v446 = vld [vmem:[#allocation2 + $0x3b0] sm:$0xff]
    %v447 = vld [vmem:[#allocation2 + $0x3b8] sm:$0xff]
    %v448 = vld [vmem:[#allocation2 + $0x3c0] sm:$0xff]
    %v449 = vld [vmem:[#allocation2 + $0x3c8] sm:$0xff]
    %v450 = vld [vmem:[#allocation2 + $0x3d0] sm:$0xff]
    %v451 = vld [vmem:[#allocation2 + $0x3d8] sm:$0xff]
    %v452 = vld [vmem:[#allocation2 + $0x3e0] sm:$0xff]
    %v453 = vld [vmem:[#allocation2 + $0x3e8] sm:$0xff]
    %v454 = vld [vmem:[#allocation2 + $0x3f0] sm:$0xff]
    %v455 = vld [vmem:[#allocation2 + $0x3f8] sm:$0xff]
    %v456 = vld [vmem:[#allocation2 + $0x400] sm:$0xff]
    %v457 = vld [vmem:[#allocation2 + $0x408] sm:$0xff]
    %v458 = vld [vmem:[#allocation2 + $0x410] sm:$0xff]
    %v459 = vld [vmem:[#allocation2 + $0x418] sm:$0xff]
    %v460 = vld [vmem:[#allocation2 + $0x420] sm:$0xff]
    %v461 = vld [vmem:[#allocation2 + $0x428] sm:$0xff]
    %v462 = vld [vmem:[#allocation2 + $0x430] sm:$0xff]
    %v463 = vld [vmem:[#allocation2 + $0x438] sm:$0xff]
    %v464 = vld [vmem:[#allocation2 + $0x440] sm:$0xff]
    %v465 = vld [vmem:[#allocation2 + $0x448] sm:$0xff]
    %v466 = vld [vmem:[#allocation2 + $0x450] sm:$0xff]
    %v467 = vld [vmem:[#allocation2 + $0x458] sm:$0xff]
    %v468 = vld [vmem:[#allocation2 + $0x460] sm:$0xff]
    %v469 = vld [vmem:[#allocation2 + $0x468] sm:$0xff]
    %v470 = vld [vmem:[#allocation2 + $0x470] sm:$0xff]
    %v471 = vld [vmem:[#allocation2 + $0x478] sm:$0xff]
    %v472 = vld [vmem:[#allocation2 + $0x480] sm:$0xff]
    %v473 = vld [vmem:[#allocation2 + $0x488] sm:$0xff]
    %v474 = vld [vmem:[#allocation2 + $0x490] sm:$0xff]
    %v475 = vld [vmem:[#allocation2 + $0x498] sm:$0xff]
    %v476 = vld [vmem:[#allocation2 + $0x4a0] sm:$0xff]
    %v477 = vld [vmem:[#allocation2 + $0x4a8] sm:$0xff]
    %v478 = vld [vmem:[#allocation2 + $0x4b0] sm:$0xff]
    %v479 = vld [vmem:[#allocation2 + $0x4b8] sm:$0xff]
    %v480 = vld [vmem:[#allocation2 + $0x4c0] sm:$0xff]
    %v481 = vld [vmem:[#allocation2 + $0x4c8] sm:$0xff]
    %v482 = vld [vmem:[#allocation2 + $0x4d0] sm:$0xff]
    %v483 = vld [vmem:[#allocation2 + $0x4d8] sm:$0xff]
    %v484 = vld [vmem:[#allocation2 + $0x4e0] sm:$0xff]
    %v485 = vld [vmem:[#allocation2 + $0x4e8] sm:$0xff]
    %v486 = vld [vmem:[#allocation2 + $0x4f0] sm:$0xff]
    %v487 = vld [vmem:[#allocation2 + $0x4f8] sm:$0xff]
    %v488 = vld [vmem:[#allocation2 + $0x500] sm:$0xff]
    %v489 = vld [vmem:[#allocation2 + $0x508] sm:$0xff]
    %v490 = vld [vmem:[#allocation2 + $0x510] sm:$0xff]
    %v491 = vld [vmem:[#allocation2 + $0x518] sm:$0xff]
    %v492 = vld [vmem:[#allocation2 + $0x520] sm:$0xff]
    %v493 = vld [vmem:[#allocation2 + $0x528] sm:$0xff]
    %v494 = vld [vmem:[#allocation2 + $0x530] sm:$0xff]
    %v495 = vld [vmem:[#allocation2 + $0x538] sm:$0xff]
    %v496 = vld [vmem:[#allocation2 + $0x540] sm:$0xff]
    %v497 = vld [vmem:[#allocation2 + $0x548] sm:$0xff]
    %v498 = vld [vmem:[#allocation2 + $0x550] sm:$0xff]
    %v499 = vld [vmem:[#allocation2 + $0x558] sm:$0xff]
    %v500 = vld [vmem:[#allocation2 + $0x560] sm:$0xff]
    %v501 = vld [vmem:[#allocation2 + $0x568] sm:$0xff]
    %v502 = vld [vmem:[#allocation2 + $0x570] sm:$0xff]
    %v503 = vld [vmem:[#allocation2 + $0x578] sm:$0xff]
    %v504 = vld [vmem:[#allocation2 + $0x580] sm:$0xff]
    %v505 = vld [vmem:[#allocation2 + $0x588] sm:$0xff]
    %v506 = vld [vmem:[#allocation2 + $0x590] sm:$0xff]
    %v507 = vld [vmem:[#allocation2 + $0x598] sm:$0xff]
    %v508 = vld [vmem:[#allocation2 + $0x5a0] sm:$0xff]
    %v509 = vld [vmem:[#allocation2 + $0x5a8] sm:$0xff]
    %v510 = vld [vmem:[#allocation2 + $0x5b0] sm:$0xff]
    %v511 = vld [vmem:[#allocation2 + $0x5b8] sm:$0xff]
    %v512 = vld [vmem:[#allocation2 + $0x5c0] sm:$0xff]
    %v513 = vld [vmem:[#allocation2 + $0x5c8] sm:$0xff]
    %v514 = vld [vmem:[#allocation2 + $0x5d0] sm:$0xff]
    %v515 = vld [vmem:[#allocation2 + $0x5d8] sm:$0xff]
    %v516 = vld [vmem:[#allocation2 + $0x5e0] sm:$0xff]
    %v517 = vld [vmem:[#allocation2 + $0x5e8] sm:$0xff]
    %v518 = vld [vmem:[#allocation2 + $0x5f0] sm:$0xff]
    %v519 = vld [vmem:[#allocation2 + $0x5f8] sm:$0xff]
    %v520 = vld [vmem:[%s5] sm:$0xff]
    %v522 = vperm.slane %v520, 0
    %v523 = vperm.slane %v520, 1
    %v524 = vperm.slane %v520, 2
    %v525 = vperm.slane %v520, 3
    %v526 = vperm.slane %v520, 4
    %v527 = vperm.slane %v520, 5
    %v528 = vperm.slane %v520, 6
    %v529 = vperm.slane %v520, 7
    %v730 = vunpack.c.l.b16 %v328
    %v731 = vunpack.c.h.b16 %v328
    %v732 = vunpack.c.l.b16 %v329
    %v733 = vunpack.c.h.b16 %v329
    %v734 = vunpack.c.l.b16 %v330
    %v735 = vunpack.c.h.b16 %v330
    %v736 = vunpack.c.l.b16 %v331
    %v737 = vunpack.c.h.b16 %v331
    %v738 = vunpack.c.l.b16 %v332
    %v739 = vunpack.c.h.b16 %v332
    %v740 = vunpack.c.l.b16 %v333
    %v741 = vunpack.c.h.b16 %v333
    %v742 = vunpack.c.l.b16 %v334
    %v743 = vunpack.c.h.b16 %v334
    %v744 = vunpack.c.l.b16 %v335
    %v745 = vunpack.c.h.b16 %v335
    %v746 = vunpack.c.l.b16 %v336
    %v747 = vunpack.c.h.b16 %v336
    %v748 = vunpack.c.l.b16 %v337
    %v749 = vunpack.c.h.b16 %v337
    %v750 = vunpack.c.l.b16 %v338
    %v751 = vunpack.c.h.b16 %v338
    %v752 = vunpack.c.l.b16 %v339
    %v753 = vunpack.c.h.b16 %v339
    %v754 = vunpack.c.l.b16 %v340
    %v755 = vunpack.c.h.b16 %v340
    %v756 = vunpack.c.l.b16 %v341
    %v757 = vunpack.c.h.b16 %v341
    %v758 = vunpack.c.l.b16 %v342
    %v759 = vunpack.c.h.b16 %v342
    %v760 = vunpack.c.l.b16 %v343
    %v761 = vunpack.c.h.b16 %v343
    %v762 = vunpack.c.l.b16 %v344
    %v763 = vunpack.c.h.b16 %v344
    %v764 = vunpack.c.l.b16 %v345
    %v765 = vunpack.c.h.b16 %v345
    %v766 = vunpack.c.l.b16 %v346
    %v767 = vunpack.c.h.b16 %v346
    %v768 = vunpack.c.l.b16 %v347
    %v769 = vunpack.c.h.b16 %v347
    %v770 = vunpack.c.l.b16 %v348
    %v771 = vunpack.c.h.b16 %v348
    %v772 = vunpack.c.l.b16 %v349
    %v773 = vunpack.c.h.b16 %v349
    %v774 = vunpack.c.l.b16 %v350
    %v775 = vunpack.c.h.b16 %v350
    %v776 = vunpack.c.l.b16 %v351
    %v777 = vunpack.c.h.b16 %v351
    %v778 = vunpack.c.l.b16 %v352
    %v779 = vunpack.c.h.b16 %v352
    %v780 = vunpack.c.l.b16 %v353
    %v781 = vunpack.c.h.b16 %v353
    %v782 = vunpack.c.l.b16 %v354
    %v783 = vunpack.c.h.b16 %v354
    %v784 = vunpack.c.l.b16 %v355
    %v785 = vunpack.c.h.b16 %v355
    %v786 = vunpack.c.l.b16 %v356
    %v787 = vunpack.c.h.b16 %v356
    %v788 = vunpack.c.l.b16 %v357
    %v789 = vunpack.c.h.b16 %v357
    %v790 = vunpack.c.l.b16 %v358
    %v791 = vunpack.c.h.b16 %v358
    %v792 = vunpack.c.l.b16 %v359
    %v793 = vunpack.c.h.b16 %v359
    %v794 = vunpack.c.l.b16 %v360
    %v795 = vunpack.c.h.b16 %v360
    %v796 = vunpack.c.l.b16 %v361
    %v797 = vunpack.c.h.b16 %v361
    %v798 = vunpack.c.l.b16 %v362
    %v799 = vunpack.c.h.b16 %v362
    %v800 = vunpack.c.l.b16 %v363
    %v801 = vunpack.c.h.b16 %v363
    %v802 = vunpack.c.l.b16 %v364
    %v803 = vunpack.c.h.b16 %v364
    %v804 = vunpack.c.l.b16 %v365
    %v805 = vunpack.c.h.b16 %v365
    %v806 = vunpack.c.l.b16 %v366
    %v807 = vunpack.c.h.b16 %v366
    %v808 = vunpack.c.l.b16 %v367
    %v809 = vunpack.c.h.b16 %v367
    %v810 = vunpack.c.l.b16 %v368
    %v811 = vunpack.c.h.b16 %v368
    %v812 = vunpack.c.l.b16 %v369
    %v813 = vunpack.c.h.b16 %v369
    %v814 = vunpack.c.l.b16 %v370
    %v815 = vunpack.c.h.b16 %v370
    %v816 = vunpack.c.l.b16 %v371
    %v817 = vunpack.c.h.b16 %v371
    %v818 = vunpack.c.l.b16 %v372
    %v819 = vunpack.c.h.b16 %v372
    %v820 = vunpack.c.l.b16 %v373
    %v821 = vunpack.c.h.b16 %v373
    %v822 = vunpack.c.l.b16 %v374
    %v823 = vunpack.c.h.b16 %v374
    %v824 = vunpack.c.l.b16 %v375
    %v825 = vunpack.c.h.b16 %v375
    %v826 = vunpack.c.l.b16 %v376
    %v827 = vunpack.c.h.b16 %v376
    %v828 = vunpack.c.l.b16 %v377
    %v829 = vunpack.c.h.b16 %v377
    %v830 = vunpack.c.l.b16 %v378
    %v831 = vunpack.c.h.b16 %v378
    %v832 = vunpack.c.l.b16 %v379
    %v833 = vunpack.c.h.b16 %v379
    %v834 = vunpack.c.l.b16 %v380
    %v835 = vunpack.c.h.b16 %v380
    %v836 = vunpack.c.l.b16 %v381
    %v837 = vunpack.c.h.b16 %v381
    %v838 = vunpack.c.l.b16 %v382
    %v839 = vunpack.c.h.b16 %v382
    %v840 = vunpack.c.l.b16 %v383
    %v841 = vunpack.c.h.b16 %v383
    %v842 = vunpack.c.l.b16 %v384
    %v843 = vunpack.c.h.b16 %v384
    %v844 = vunpack.c.l.b16 %v385
    %v845 = vunpack.c.h.b16 %v385
    %v846 = vunpack.c.l.b16 %v386
    %v847 = vunpack.c.h.b16 %v386
    %v848 = vunpack.c.l.b16 %v387
    %v849 = vunpack.c.h.b16 %v387
    %v850 = vunpack.c.l.b16 %v388
    %v851 = vunpack.c.h.b16 %v388
    %v852 = vunpack.c.l.b16 %v389
    %v853 = vunpack.c.h.b16 %v389
    %v854 = vunpack.c.l.b16 %v390
    %v855 = vunpack.c.h.b16 %v390
    %v856 = vunpack.c.l.b16 %v391
    %v857 = vunpack.c.h.b16 %v391
    %v858 = vunpack.c.l.b16 %v392
    %v859 = vunpack.c.h.b16 %v392
    %v860 = vunpack.c.l.b16 %v393
    %v861 = vunpack.c.h.b16 %v393
    %v862 = vunpack.c.l.b16 %v394
    %v863 = vunpack.c.h.b16 %v394
    %v864 = vunpack.c.l.b16 %v395
    %v865 = vunpack.c.h.b16 %v395
    %v866 = vunpack.c.l.b16 %v396
    %v867 = vunpack.c.h.b16 %v396
    %v868 = vunpack.c.l.b16 %v397
    %v869 = vunpack.c.h.b16 %v397
    %v870 = vunpack.c.l.b16 %v398
    %v871 = vunpack.c.h.b16 %v398
    %v872 = vunpack.c.l.b16 %v399
    %v873 = vunpack.c.h.b16 %v399
    %v874 = vunpack.c.l.b16 %v400
    %v875 = vunpack.c.h.b16 %v400
    %v876 = vunpack.c.l.b16 %v401
    %v877 = vunpack.c.h.b16 %v401
    %v878 = vunpack.c.l.b16 %v402
    %v879 = vunpack.c.h.b16 %v402
    %v880 = vunpack.c.l.b16 %v403
    %v881 = vunpack.c.h.b16 %v403
    %v882 = vunpack.c.l.b16 %v404
    %v883 = vunpack.c.h.b16 %v404
    %v884 = vunpack.c.l.b16 %v405
    %v885 = vunpack.c.h.b16 %v405
    %v886 = vunpack.c.l.b16 %v406
    %v887 = vunpack.c.h.b16 %v406
    %v888 = vunpack.c.l.b16 %v407
    %v889 = vunpack.c.h.b16 %v407
    %v890 = vunpack.c.l.b16 %v408
    %v891 = vunpack.c.h.b16 %v408
    %v892 = vunpack.c.l.b16 %v409
    %v893 = vunpack.c.h.b16 %v409
    %v894 = vunpack.c.l.b16 %v410
    %v895 = vunpack.c.h.b16 %v410
    %v896 = vunpack.c.l.b16 %v411
    %v897 = vunpack.c.h.b16 %v411
    %v898 = vunpack.c.l.b16 %v412
    %v899 = vunpack.c.h.b16 %v412
    %v900 = vunpack.c.l.b16 %v413
    %v901 = vunpack.c.h.b16 %v413
    %v902 = vunpack.c.l.b16 %v414
    %v903 = vunpack.c.h.b16 %v414
    %v904 = vunpack.c.l.b16 %v415
    %v905 = vunpack.c.h.b16 %v415
    %v906 = vunpack.c.l.b16 %v416
    %v907 = vunpack.c.h.b16 %v416
    %v908 = vunpack.c.l.b16 %v417
    %v909 = vunpack.c.h.b16 %v417
    %v910 = vunpack.c.l.b16 %v418
    %v911 = vunpack.c.h.b16 %v418
    %v912 = vunpack.c.l.b16 %v419
    %v913 = vunpack.c.h.b16 %v419
    %v914 = vunpack.c.l.b16 %v420
    %v915 = vunpack.c.h.b16 %v420
    %v916 = vunpack.c.l.b16 %v421
    %v917 = vunpack.c.h.b16 %v421
    %v918 = vunpack.c.l.b16 %v422
    %v919 = vunpack.c.h.b16 %v422
    %v920 = vunpack.c.l.b16 %v423
    %v921 = vunpack.c.h.b16 %v423
    %v922 = vunpack.c.l.b16 %v424
    %v923 = vunpack.c.h.b16 %v424
    %v924 = vunpack.c.l.b16 %v425
    %v925 = vunpack.c.h.b16 %v425
    %v926 = vunpack.c.l.b16 %v426
    %v927 = vunpack.c.h.b16 %v426
    %v928 = vunpack.c.l.b16 %v427
    %v929 = vunpack.c.h.b16 %v427
    %v930 = vunpack.c.l.b16 %v428
    %v931 = vunpack.c.h.b16 %v428
    %v932 = vunpack.c.l.b16 %v429
    %v933 = vunpack.c.h.b16 %v429
    %v934 = vunpack.c.l.b16 %v430
    %v935 = vunpack.c.h.b16 %v430
    %v936 = vunpack.c.l.b16 %v431
    %v937 = vunpack.c.h.b16 %v431
    %v938 = vunpack.c.l.b16 %v432
    %v939 = vunpack.c.h.b16 %v432
    %v940 = vunpack.c.l.b16 %v433
    %v941 = vunpack.c.h.b16 %v433
    %v942 = vunpack.c.l.b16 %v434
    %v943 = vunpack.c.h.b16 %v434
    %v944 = vunpack.c.l.b16 %v435
    %v945 = vunpack.c.h.b16 %v435
    %v946 = vunpack.c.l.b16 %v436
    %v947 = vunpack.c.h.b16 %v436
    %v948 = vunpack.c.l.b16 %v437
    %v949 = vunpack.c.h.b16 %v437
    %v950 = vunpack.c.l.b16 %v438
    %v951 = vunpack.c.h.b16 %v438
    %v952 = vunpack.c.l.b16 %v439
    %v953 = vunpack.c.h.b16 %v439
    %v954 = vunpack.c.l.b16 %v440
    %v955 = vunpack.c.h.b16 %v440
    %v956 = vunpack.c.l.b16 %v441
    %v957 = vunpack.c.h.b16 %v441
    %v958 = vunpack.c.l.b16 %v442
    %v959 = vunpack.c.h.b16 %v442
    %v960 = vunpack.c.l.b16 %v443
    %v961 = vunpack.c.h.b16 %v443
    %v962 = vunpack.c.l.b16 %v444
    %v963 = vunpack.c.h.b16 %v444
    %v964 = vunpack.c.l.b16 %v445
    %v965 = vunpack.c.h.b16 %v445
    %v966 = vunpack.c.l.b16 %v446
    %v967 = vunpack.c.h.b16 %v446
    %v968 = vunpack.c.l.b16 %v447
    %v969 = vunpack.c.h.b16 %v447
    %v970 = vunpack.c.l.b16 %v448
    %v971 = vunpack.c.h.b16 %v448
    %v972 = vunpack.c.l.b16 %v449
    %v973 = vunpack.c.h.b16 %v449
    %v974 = vunpack.c.l.b16 %v450
    %v975 = vunpack.c.h.b16 %v450
    %v976 = vunpack.c.l.b16 %v451
    %v977 = vunpack.c.h.b16 %v451
    %v978 = vunpack.c.l.b16 %v452
    %v979 = vunpack.c.h.b16 %v452
    %v980 = vunpack.c.l.b16 %v453
    %v981 = vunpack.c.h.b16 %v453
    %v982 = vunpack.c.l.b16 %v454
    %v983 = vunpack.c.h.b16 %v454
    %v984 = vunpack.c.l.b16 %v455
    %v985 = vunpack.c.h.b16 %v455
    %v986 = vunpack.c.l.b16 %v456
    %v987 = vunpack.c.h.b16 %v456
    %v988 = vunpack.c.l.b16 %v457
    %v989 = vunpack.c.h.b16 %v457
    %v990 = vunpack.c.l.b16 %v458
    %v991 = vunpack.c.h.b16 %v458
    %v992 = vunpack.c.l.b16 %v459
    %v993 = vunpack.c.h.b16 %v459
    %v994 = vunpack.c.l.b16 %v460
    %v995 = vunpack.c.h.b16 %v460
    %v996 = vunpack.c.l.b16 %v461
    %v997 = vunpack.c.h.b16 %v461
    %v998 = vunpack.c.l.b16 %v462
    %v999 = vunpack.c.h.b16 %v462
    %v1000 = vunpack.c.l.b16 %v463
    %v1001 = vunpack.c.h.b16 %v463
    %v1002 = vunpack.c.l.b16 %v464
    %v1003 = vunpack.c.h.b16 %v464
    %v1004 = vunpack.c.l.b16 %v465
    %v1005 = vunpack.c.h.b16 %v465
    %v1006 = vunpack.c.l.b16 %v466
    %v1007 = vunpack.c.h.b16 %v466
    %v1008 = vunpack.c.l.b16 %v467
    %v1009 = vunpack.c.h.b16 %v467
    %v1010 = vunpack.c.l.b16 %v468
    %v1011 = vunpack.c.h.b16 %v468
    %v1012 = vunpack.c.l.b16 %v469
    %v1013 = vunpack.c.h.b16 %v469
    %v1014 = vunpack.c.l.b16 %v470
    %v1015 = vunpack.c.h.b16 %v470
    %v1016 = vunpack.c.l.b16 %v471
    %v1017 = vunpack.c.h.b16 %v471
    %v1018 = vunpack.c.l.b16 %v472
    %v1019 = vunpack.c.h.b16 %v472
    %v1020 = vunpack.c.l.b16 %v473
    %v1021 = vunpack.c.h.b16 %v473
    %v1022 = vunpack.c.l.b16 %v474
    %v1023 = vunpack.c.h.b16 %v474
    %v1024 = vunpack.c.l.b16 %v475
    %v1025 = vunpack.c.h.b16 %v475
    %v1026 = vunpack.c.l.b16 %v476
    %v1027 = vunpack.c.h.b16 %v476
    %v1028 = vunpack.c.l.b16 %v477
    %v1029 = vunpack.c.h.b16 %v477
    %v1030 = vunpack.c.l.b16 %v478
    %v1031 = vunpack.c.h.b16 %v478
    %v1032 = vunpack.c.l.b16 %v479
    %v1033 = vunpack.c.h.b16 %v479
    %v1034 = vunpack.c.l.b16 %v480
    %v1035 = vunpack.c.h.b16 %v480
    %v1036 = vunpack.c.l.b16 %v481
    %v1037 = vunpack.c.h.b16 %v481
    %v1038 = vunpack.c.l.b16 %v482
    %v1039 = vunpack.c.h.b16 %v482
    %v1040 = vunpack.c.l.b16 %v483
    %v1041 = vunpack.c.h.b16 %v483
    %v1042 = vunpack.c.l.b16 %v484
    %v1043 = vunpack.c.h.b16 %v484
    %v1044 = vunpack.c.l.b16 %v485
    %v1045 = vunpack.c.h.b16 %v485
    %v1046 = vunpack.c.l.b16 %v486
    %v1047 = vunpack.c.h.b16 %v486
    %v1048 = vunpack.c.l.b16 %v487
    %v1049 = vunpack.c.h.b16 %v487
    %v1050 = vunpack.c.l.b16 %v488
    %v1051 = vunpack.c.h.b16 %v488
    %v1052 = vunpack.c.l.b16 %v489
    %v1053 = vunpack.c.h.b16 %v489
    %v1054 = vunpack.c.l.b16 %v490
    %v1055 = vunpack.c.h.b16 %v490
    %v1056 = vunpack.c.l.b16 %v491
    %v1057 = vunpack.c.h.b16 %v491
    %v1058 = vunpack.c.l.b16 %v492
    %v1059 = vunpack.c.h.b16 %v492
    %v1060 = vunpack.c.l.b16 %v493
    %v1061 = vunpack.c.h.b16 %v493
    %v1062 = vunpack.c.l.b16 %v494
    %v1063 = vunpack.c.h.b16 %v494
    %v1064 = vunpack.c.l.b16 %v495
    %v1065 = vunpack.c.h.b16 %v495
    %v1066 = vunpack.c.l.b16 %v496
    %v1067 = vunpack.c.h.b16 %v496
    %v1068 = vunpack.c.l.b16 %v497
    %v1069 = vunpack.c.h.b16 %v497
    %v1070 = vunpack.c.l.b16 %v498
    %v1071 = vunpack.c.h.b16 %v498
    %v1072 = vunpack.c.l.b16 %v499
    %v1073 = vunpack.c.h.b16 %v499
    %v1074 = vunpack.c.l.b16 %v500
    %v1075 = vunpack.c.h.b16 %v500
    %v1076 = vunpack.c.l.b16 %v501
    %v1077 = vunpack.c.h.b16 %v501
    %v1078 = vunpack.c.l.b16 %v502
    %v1079 = vunpack.c.h.b16 %v502
    %v1080 = vunpack.c.l.b16 %v503
    %v1081 = vunpack.c.h.b16 %v503
    %v1082 = vunpack.c.l.b16 %v504
    %v1083 = vunpack.c.h.b16 %v504
    %v1084 = vunpack.c.l.b16 %v505
    %v1085 = vunpack.c.h.b16 %v505
    %v1086 = vunpack.c.l.b16 %v506
    %v1087 = vunpack.c.h.b16 %v506
    %v1088 = vunpack.c.l.b16 %v507
    %v1089 = vunpack.c.h.b16 %v507
    %v1090 = vunpack.c.l.b16 %v508
    %v1091 = vunpack.c.h.b16 %v508
    %v1092 = vunpack.c.l.b16 %v509
    %v1093 = vunpack.c.h.b16 %v509
    %v1094 = vunpack.c.l.b16 %v510
    %v1095 = vunpack.c.h.b16 %v510
    %v1096 = vunpack.c.l.b16 %v511
    %v1097 = vunpack.c.h.b16 %v511
    %v1098 = vunpack.c.l.b16 %v512
    %v1099 = vunpack.c.h.b16 %v512
    %v1100 = vunpack.c.l.b16 %v513
    %v1101 = vunpack.c.h.b16 %v513
    %v1102 = vunpack.c.l.b16 %v514
    %v1103 = vunpack.c.h.b16 %v514
    %v1104 = vunpack.c.l.b16 %v515
    %v1105 = vunpack.c.h.b16 %v515
    %v1106 = vunpack.c.l.b16 %v516
    %v1107 = vunpack.c.h.b16 %v516
    %v1108 = vunpack.c.l.b16 %v517
    %v1109 = vunpack.c.h.b16 %v517
    %v1110 = vunpack.c.l.b16 %v518
    %v1111 = vunpack.c.h.b16 %v518
    %v1112 = vunpack.c.l.b16 %v519
    %v1113 = vunpack.c.h.b16 %v519
    %v1114 = vpack.c.b16 %v738, %v730
    %v1115 = vpack.c.b16 %v739, %v731
    %v1116 = vpack.c.b16 %v740, %v732
    %v1117 = vpack.c.b16 %v741, %v733
    %v1118 = vpack.c.b16 %v742, %v734
    %v1119 = vpack.c.b16 %v743, %v735
    %v1120 = vpack.c.b16 %v744, %v736
    %v1121 = vpack.c.b16 %v745, %v737
    %v1122 = vpack.c.b16 %v754, %v746
    %v1123 = vpack.c.b16 %v755, %v747
    %v1124 = vpack.c.b16 %v756, %v748
    %v1125 = vpack.c.b16 %v757, %v749
    %v1126 = vpack.c.b16 %v758, %v750
    %v1127 = vpack.c.b16 %v759, %v751
    %v1128 = vpack.c.b16 %v760, %v752
    %v1129 = vpack.c.b16 %v761, %v753
    %v1130 = vpack.c.b16 %v770, %v762
    %v1131 = vpack.c.b16 %v771, %v763
    %v1132 = vpack.c.b16 %v772, %v764
    %v1133 = vpack.c.b16 %v773, %v765
    %v1134 = vpack.c.b16 %v774, %v766
    %v1135 = vpack.c.b16 %v775, %v767
    %v1136 = vpack.c.b16 %v776, %v768
    %v1137 = vpack.c.b16 %v777, %v769
    %v1138 = vpack.c.b16 %v786, %v778
    %v1139 = vpack.c.b16 %v787, %v779
    %v1140 = vpack.c.b16 %v788, %v780
    %v1141 = vpack.c.b16 %v789, %v781
    %v1142 = vpack.c.b16 %v790, %v782
    %v1143 = vpack.c.b16 %v791, %v783
    %v1144 = vpack.c.b16 %v792, %v784
    %v1145 = vpack.c.b16 %v793, %v785
    %v1146 = vpack.c.b16 %v802, %v794
    %v1147 = vpack.c.b16 %v803, %v795
    %v1148 = vpack.c.b16 %v804, %v796
    %v1149 = vpack.c.b16 %v805, %v797
    %v1150 = vpack.c.b16 %v806, %v798
    %v1151 = vpack.c.b16 %v807, %v799
    %v1152 = vpack.c.b16 %v808, %v800
    %v1153 = vpack.c.b16 %v809, %v801
    %v1154 = vpack.c.b16 %v818, %v810
    %v1155 = vpack.c.b16 %v819, %v811
    %v1156 = vpack.c.b16 %v820, %v812
    %v1157 = vpack.c.b16 %v821, %v813
    %v1158 = vpack.c.b16 %v822, %v814
    %v1159 = vpack.c.b16 %v823, %v815
    %v1160 = vpack.c.b16 %v824, %v816
    %v1161 = vpack.c.b16 %v825, %v817
    %v1162 = vpack.c.b16 %v834, %v826
    %v1163 = vpack.c.b16 %v835, %v827
    %v1164 = vpack.c.b16 %v836, %v828
    %v1165 = vpack.c.b16 %v837, %v829
    %v1166 = vpack.c.b16 %v838, %v830
    %v1167 = vpack.c.b16 %v839, %v831
    %v1168 = vpack.c.b16 %v840, %v832
    %v1169 = vpack.c.b16 %v841, %v833
    %v1170 = vpack.c.b16 %v850, %v842
    %v1171 = vpack.c.b16 %v851, %v843
    %v1172 = vpack.c.b16 %v852, %v844
    %v1173 = vpack.c.b16 %v853, %v845
    %v1174 = vpack.c.b16 %v854, %v846
    %v1175 = vpack.c.b16 %v855, %v847
    %v1176 = vpack.c.b16 %v856, %v848
    %v1177 = vpack.c.b16 %v857, %v849
    %v1178 = vpack.c.b16 %v866, %v858
    %v1179 = vpack.c.b16 %v867, %v859
    %v1180 = vpack.c.b16 %v868, %v860
    %v1181 = vpack.c.b16 %v869, %v861
    %v1182 = vpack.c.b16 %v870, %v862
    %v1183 = vpack.c.b16 %v871, %v863
    %v1184 = vpack.c.b16 %v872, %v864
    %v1185 = vpack.c.b16 %v873, %v865
    %v1186 = vpack.c.b16 %v882, %v874
    %v1187 = vpack.c.b16 %v883, %v875
    %v1188 = vpack.c.b16 %v884, %v876
    %v1189 = vpack.c.b16 %v885, %v877
    %v1190 = vpack.c.b16 %v886, %v878
    %v1191 = vpack.c.b16 %v887, %v879
    %v1192 = vpack.c.b16 %v888, %v880
    %v1193 = vpack.c.b16 %v889, %v881
    %v1194 = vpack.c.b16 %v898, %v890
    %v1195 = vpack.c.b16 %v899, %v891
    %v1196 = vpack.c.b16 %v900, %v892
    %v1197 = vpack.c.b16 %v901, %v893
    %v1198 = vpack.c.b16 %v902, %v894
    %v1199 = vpack.c.b16 %v903, %v895
    %v1200 = vpack.c.b16 %v904, %v896
    %v1201 = vpack.c.b16 %v905, %v897
    %v1202 = vpack.c.b16 %v914, %v906
    %v1203 = vpack.c.b16 %v915, %v907
    %v1204 = vpack.c.b16 %v916, %v908
    %v1205 = vpack.c.b16 %v917, %v909
    %v1206 = vpack.c.b16 %v918, %v910
    %v1207 = vpack.c.b16 %v919, %v911
    %v1208 = vpack.c.b16 %v920, %v912
    %v1209 = vpack.c.b16 %v921, %v913
    %v1210 = vpack.c.b16 %v930, %v922
    %v1211 = vpack.c.b16 %v931, %v923
    %v1212 = vpack.c.b16 %v932, %v924
    %v1213 = vpack.c.b16 %v933, %v925
    %v1214 = vpack.c.b16 %v934, %v926
    %v1215 = vpack.c.b16 %v935, %v927
    %v1216 = vpack.c.b16 %v936, %v928
    %v1217 = vpack.c.b16 %v937, %v929
    %v1218 = vpack.c.b16 %v946, %v938
    %v1219 = vpack.c.b16 %v947, %v939
    %v1220 = vpack.c.b16 %v948, %v940
    %v1221 = vpack.c.b16 %v949, %v941
    %v1222 = vpack.c.b16 %v950, %v942
    %v1223 = vpack.c.b16 %v951, %v943
    %v1224 = vpack.c.b16 %v952, %v944
    %v1225 = vpack.c.b16 %v953, %v945
    %v1226 = vpack.c.b16 %v962, %v954
    %v1227 = vpack.c.b16 %v963, %v955
    %v1228 = vpack.c.b16 %v964, %v956
    %v1229 = vpack.c.b16 %v965, %v957
    %v1230 = vpack.c.b16 %v966, %v958
    %v1231 = vpack.c.b16 %v967, %v959
    %v1232 = vpack.c.b16 %v968, %v960
    %v1233 = vpack.c.b16 %v969, %v961
    %v1234 = vpack.c.b16 %v978, %v970
    %v1235 = vpack.c.b16 %v979, %v971
    %v1236 = vpack.c.b16 %v980, %v972
    %v1237 = vpack.c.b16 %v981, %v973
    %v1238 = vpack.c.b16 %v982, %v974
    %v1239 = vpack.c.b16 %v983, %v975
    %v1240 = vpack.c.b16 %v984, %v976
    %v1241 = vpack.c.b16 %v985, %v977
    %v1242 = vpack.c.b16 %v994, %v986
    %v1243 = vpack.c.b16 %v995, %v987
    %v1244 = vpack.c.b16 %v996, %v988
    %v1245 = vpack.c.b16 %v997, %v989
    %v1246 = vpack.c.b16 %v998, %v990
    %v1247 = vpack.c.b16 %v999, %v991
    %v1248 = vpack.c.b16 %v1000, %v992
    %v1249 = vpack.c.b16 %v1001, %v993
    %v1250 = vpack.c.b16 %v1010, %v1002
    %v1251 = vpack.c.b16 %v1011, %v1003
    %v1252 = vpack.c.b16 %v1012, %v1004
    %v1253 = vpack.c.b16 %v1013, %v1005
    %v1254 = vpack.c.b16 %v1014, %v1006
    %v1255 = vpack.c.b16 %v1015, %v1007
    %v1256 = vpack.c.b16 %v1016, %v1008
    %v1257 = vpack.c.b16 %v1017, %v1009
    %v1258 = vpack.c.b16 %v1026, %v1018
    %v1259 = vpack.c.b16 %v1027, %v1019
    %v1260 = vpack.c.b16 %v1028, %v1020
    %v1261 = vpack.c.b16 %v1029, %v1021
    %v1262 = vpack.c.b16 %v1030, %v1022
    %v1263 = vpack.c.b16 %v1031, %v1023
    %v1264 = vpack.c.b16 %v1032, %v1024
    %v1265 = vpack.c.b16 %v1033, %v1025
    %v1266 = vpack.c.b16 %v1042, %v1034
    %v1267 = vpack.c.b16 %v1043, %v1035
    %v1268 = vpack.c.b16 %v1044, %v1036
    %v1269 = vpack.c.b16 %v1045, %v1037
    %v1270 = vpack.c.b16 %v1046, %v1038
    %v1271 = vpack.c.b16 %v1047, %v1039
    %v1272 = vpack.c.b16 %v1048, %v1040
    %v1273 = vpack.c.b16 %v1049, %v1041
    %v1274 = vpack.c.b16 %v1058, %v1050
    %v1275 = vpack.c.b16 %v1059, %v1051
    %v1276 = vpack.c.b16 %v1060, %v1052
    %v1277 = vpack.c.b16 %v1061, %v1053
    %v1278 = vpack.c.b16 %v1062, %v1054
    %v1279 = vpack.c.b16 %v1063, %v1055
    %v1280 = vpack.c.b16 %v1064, %v1056
    %v1281 = vpack.c.b16 %v1065, %v1057
    %v1282 = vpack.c.b16 %v1074, %v1066
    %v1283 = vpack.c.b16 %v1075, %v1067
    %v1284 = vpack.c.b16 %v1076, %v1068
    %v1285 = vpack.c.b16 %v1077, %v1069
    %v1286 = vpack.c.b16 %v1078, %v1070
    %v1287 = vpack.c.b16 %v1079, %v1071
    %v1288 = vpack.c.b16 %v1080, %v1072
    %v1289 = vpack.c.b16 %v1081, %v1073
    %v1290 = vpack.c.b16 %v1090, %v1082
    %v1291 = vpack.c.b16 %v1091, %v1083
    %v1292 = vpack.c.b16 %v1092, %v1084
    %v1293 = vpack.c.b16 %v1093, %v1085
    %v1294 = vpack.c.b16 %v1094, %v1086
    %v1295 = vpack.c.b16 %v1095, %v1087
    %v1296 = vpack.c.b16 %v1096, %v1088
    %v1297 = vpack.c.b16 %v1097, %v1089
    %v1298 = vpack.c.b16 %v1106, %v1098
    %v1299 = vpack.c.b16 %v1107, %v1099
    %v1300 = vpack.c.b16 %v1108, %v1100
    %v1301 = vpack.c.b16 %v1109, %v1101
    %v1302 = vpack.c.b16 %v1110, %v1102
    %v1303 = vpack.c.b16 %v1111, %v1103
    %v1304 = vpack.c.b16 %v1112, %v1104
    %v1305 = vpack.c.b16 %v1113, %v1105
    %1498 = vmatpush.bf16.msra.mxu0 %v1170
    %1499 = vmatpush.bf16.msra.mxu0 %v1162
    %1500 = vmatpush.bf16.msra.mxu0 %v1154
    %1501 = vmatpush.bf16.msra.mxu0 %v1146
    %1502 = vmatpush.bf16.msra.mxu0 %v1138
    %1503 = vmatpush.bf16.msra.mxu0 %v1130
    %1504 = vmatpush.bf16.msra.mxu0 %v1122
    %1505 = vmatpush.bf16.msra.mxu0 %v1114
    %1506 = vmatmul.bf16.gmra.mxu0 %v325
    %v1507 = vpop.f32.mrf.mxu0
    %v1508 = vadd.f32 %v522, %v1507
    %v1509 = vpop.f32.mrf.mxu0
    %1510 = vdwg.mxu0
    %1511 = vmatpush.bf16.msra.mxu0 %v1234
    %1512 = vmatpush.bf16.msra.mxu0 %v1226
    %1513 = vmatpush.bf16.msra.mxu0 %v1218
    %1514 = vmatpush.bf16.msra.mxu0 %v1210
    %1515 = vmatpush.bf16.msra.mxu0 %v1202
    %1516 = vmatpush.bf16.msra.mxu0 %v1194
    %1517 = vmatpush.bf16.msra.mxu0 %v1186
    %1518 = vmatpush.bf16.msra.mxu0 %v1178
    %1519 = vmatmul.bf16.gmra.mxu0 %v326
    %v1520 = vpop.f32.mrf.mxu0
    %v1521 = vadd.f32 %v1508, %v1520
    %v1522 = vpop.f32.mrf.mxu0
    %1523 = vdwg.mxu0
    %1524 = vmatpush.bf16.msra.mxu0 %v1298
    %1525 = vmatpush.bf16.msra.mxu0 %v1290
    %1526 = vmatpush.bf16.msra.mxu0 %v1282
    %1527 = vmatpush.bf16.msra.mxu0 %v1274
    %1528 = vmatpush.bf16.msra.mxu0 %v1266
    %1529 = vmatpush.bf16.msra.mxu0 %v1258
    %1530 = vmatpush.bf16.msra.mxu0 %v1250
    %1531 = vmatpush.bf16.msra.mxu0 %v1242
    %1532 = vmatmul.bf16.gmra.mxu0 %v327
    %v1533 = vpop.f32.mrf.mxu0
    %v1534 = vadd.f32 %v1521, %v1533
    %v1535 = vpop.f32.mrf.mxu0
    %1536 = vdwg.mxu0
    %1537 = vmatpush.bf16.msra.mxu0 %v1171
    %1538 = vmatpush.bf16.msra.mxu0 %v1163
    %1539 = vmatpush.bf16.msra.mxu0 %v1155
    %1540 = vmatpush.bf16.msra.mxu0 %v1147
    %1541 = vmatpush.bf16.msra.mxu0 %v1139
    %1542 = vmatpush.bf16.msra.mxu0 %v1131
    %1543 = vmatpush.bf16.msra.mxu0 %v1123
    %1544 = vmatpush.bf16.msra.mxu0 %v1115
    %1545 = vmatmul.bf16.gmra.mxu0 %v325
    %v1546 = vpop.f32.mrf.mxu0
    %v1547 = vadd.f32 %v523, %v1546
    %v1548 = vpop.f32.mrf.mxu0
    %1549 = vdwg.mxu0
    %1550 = vmatpush.bf16.msra.mxu0 %v1235
    %1551 = vmatpush.bf16.msra.mxu0 %v1227
    %1552 = vmatpush.bf16.msra.mxu0 %v1219
    %1553 = vmatpush.bf16.msra.mxu0 %v1211
    %1554 = vmatpush.bf16.msra.mxu0 %v1203
    %1555 = vmatpush.bf16.msra.mxu0 %v1195
    %1556 = vmatpush.bf16.msra.mxu0 %v1187
    %1557 = vmatpush.bf16.msra.mxu0 %v1179
    %1558 = vmatmul.bf16.gmra.mxu0 %v326
    %v1559 = vpop.f32.mrf.mxu0
    %v1560 = vadd.f32 %v1547, %v1559
    %v1561 = vpop.f32.mrf.mxu0
    %1562 = vdwg.mxu0
    %1563 = vmatpush.bf16.msra.mxu0 %v1299
    %1564 = vmatpush.bf16.msra.mxu0 %v1291
    %1565 = vmatpush.bf16.msra.mxu0 %v1283
    %1566 = vmatpush.bf16.msra.mxu0 %v1275
    %1567 = vmatpush.bf16.msra.mxu0 %v1267
    %1568 = vmatpush.bf16.msra.mxu0 %v1259
    %1569 = vmatpush.bf16.msra.mxu0 %v1251
    %1570 = vmatpush.bf16.msra.mxu0 %v1243
    %1571 = vmatmul.bf16.gmra.mxu0 %v327
    %v1572 = vpop.f32.mrf.mxu0
    %v1573 = vadd.f32 %v1560, %v1572
    %v1574 = vpop.f32.mrf.mxu0
    %1575 = vdwg.mxu0
    %1576 = vmatpush.bf16.msra.mxu0 %v1172
    %1577 = vmatpush.bf16.msra.mxu0 %v1164
    %1578 = vmatpush.bf16.msra.mxu0 %v1156
    %1579 = vmatpush.bf16.msra.mxu0 %v1148
    %1580 = vmatpush.bf16.msra.mxu0 %v1140
    %1581 = vmatpush.bf16.msra.mxu0 %v1132
    %1582 = vmatpush.bf16.msra.mxu0 %v1124
    %1583 = vmatpush.bf16.msra.mxu0 %v1116
    %1584 = vmatmul.bf16.gmra.mxu0 %v325
    %v1585 = vpop.f32.mrf.mxu0
    %v1586 = vadd.f32 %v524, %v1585
    %v1587 = vpop.f32.mrf.mxu0
    %1588 = vdwg.mxu0
    %1589 = vmatpush.bf16.msra.mxu0 %v1236
    %1590 = vmatpush.bf16.msra.mxu0 %v1228
    %1591 = vmatpush.bf16.msra.mxu0 %v1220
    %1592 = vmatpush.bf16.msra.mxu0 %v1212
    %1593 = vmatpush.bf16.msra.mxu0 %v1204
    %1594 = vmatpush.bf16.msra.mxu0 %v1196
    %1595 = vmatpush.bf16.msra.mxu0 %v1188
    %1596 = vmatpush.bf16.msra.mxu0 %v1180
    %1597 = vmatmul.bf16.gmra.mxu0 %v326
    %v1598 = vpop.f32.mrf.mxu0
    %v1599 = vadd.f32 %v1586, %v1598
    %v1600 = vpop.f32.mrf.mxu0
    %1601 = vdwg.mxu0
    %1602 = vmatpush.bf16.msra.mxu0 %v1300
    %1603 = vmatpush.bf16.msra.mxu0 %v1292
    %1604 = vmatpush.bf16.msra.mxu0 %v1284
    %1605 = vmatpush.bf16.msra.mxu0 %v1276
    %1606 = vmatpush.bf16.msra.mxu0 %v1268
    %1607 = vmatpush.bf16.msra.mxu0 %v1260
    %1608 = vmatpush.bf16.msra.mxu0 %v1252
    %1609 = vmatpush.bf16.msra.mxu0 %v1244
    %1610 = vmatmul.bf16.gmra.mxu0 %v327
    %v1611 = vpop.f32.mrf.mxu0
    %v1612 = vadd.f32 %v1599, %v1611
    %v1613 = vpop.f32.mrf.mxu0
    %1614 = vdwg.mxu0
    %1615 = vmatpush.bf16.msra.mxu0 %v1173
    %1616 = vmatpush.bf16.msra.mxu0 %v1165
    %1617 = vmatpush.bf16.msra.mxu0 %v1157
    %1618 = vmatpush.bf16.msra.mxu0 %v1149
    %1619 = vmatpush.bf16.msra.mxu0 %v1141
    %1620 = vmatpush.bf16.msra.mxu0 %v1133
    %1621 = vmatpush.bf16.msra.mxu0 %v1125
    %1622 = vmatpush.bf16.msra.mxu0 %v1117
    %1623 = vmatmul.bf16.gmra.mxu0 %v325
    %v1624 = vpop.f32.mrf.mxu0
    %v1625 = vadd.f32 %v525, %v1624
    %v1626 = vpop.f32.mrf.mxu0
    %1627 = vdwg.mxu0
    %1628 = vmatpush.bf16.msra.mxu0 %v1237
    %1629 = vmatpush.bf16.msra.mxu0 %v1229
    %1630 = vmatpush.bf16.msra.mxu0 %v1221
    %1631 = vmatpush.bf16.msra.mxu0 %v1213
    %1632 = vmatpush.bf16.msra.mxu0 %v1205
    %1633 = vmatpush.bf16.msra.mxu0 %v1197
    %1634 = vmatpush.bf16.msra.mxu0 %v1189
    %1635 = vmatpush.bf16.msra.mxu0 %v1181
    %1636 = vmatmul.bf16.gmra.mxu0 %v326
    %v1637 = vpop.f32.mrf.mxu0
    %v1638 = vadd.f32 %v1625, %v1637
    %v1639 = vpop.f32.mrf.mxu0
    %1640 = vdwg.mxu0
    %1641 = vmatpush.bf16.msra.mxu0 %v1301
    %1642 = vmatpush.bf16.msra.mxu0 %v1293
    %1643 = vmatpush.bf16.msra.mxu0 %v1285
    %1644 = vmatpush.bf16.msra.mxu0 %v1277
    %1645 = vmatpush.bf16.msra.mxu0 %v1269
    %1646 = vmatpush.bf16.msra.mxu0 %v1261
    %1647 = vmatpush.bf16.msra.mxu0 %v1253
    %1648 = vmatpush.bf16.msra.mxu0 %v1245
    %1649 = vmatmul.bf16.gmra.mxu0 %v327
    %v1650 = vpop.f32.mrf.mxu0
    %v1651 = vadd.f32 %v1638, %v1650
    %v1652 = vpop.f32.mrf.mxu0
    %1653 = vdwg.mxu0
    %1654 = vmatpush.bf16.msra.mxu0 %v1174
    %1655 = vmatpush.bf16.msra.mxu0 %v1166
    %1656 = vmatpush.bf16.msra.mxu0 %v1158
    %1657 = vmatpush.bf16.msra.mxu0 %v1150
    %1658 = vmatpush.bf16.msra.mxu0 %v1142
    %1659 = vmatpush.bf16.msra.mxu0 %v1134
    %1660 = vmatpush.bf16.msra.mxu0 %v1126
    %1661 = vmatpush.bf16.msra.mxu0 %v1118
    %1662 = vmatmul.bf16.gmra.mxu0 %v325
    %v1663 = vpop.f32.mrf.mxu0
    %v1664 = vadd.f32 %v526, %v1663
    %v1665 = vpop.f32.mrf.mxu0
    %1666 = vdwg.mxu0
    %1667 = vmatpush.bf16.msra.mxu0 %v1238
    %1668 = vmatpush.bf16.msra.mxu0 %v1230
    %1669 = vmatpush.bf16.msra.mxu0 %v1222
    %1670 = vmatpush.bf16.msra.mxu0 %v1214
    %1671 = vmatpush.bf16.msra.mxu0 %v1206
    %1672 = vmatpush.bf16.msra.mxu0 %v1198
    %1673 = vmatpush.bf16.msra.mxu0 %v1190
    %1674 = vmatpush.bf16.msra.mxu0 %v1182
    %1675 = vmatmul.bf16.gmra.mxu0 %v326
    %v1676 = vpop.f32.mrf.mxu0
    %v1677 = vadd.f32 %v1664, %v1676
    %v1678 = vpop.f32.mrf.mxu0
    %1679 = vdwg.mxu0
    %1680 = vmatpush.bf16.msra.mxu0 %v1302
    %1681 = vmatpush.bf16.msra.mxu0 %v1294
    %1682 = vmatpush.bf16.msra.mxu0 %v1286
    %1683 = vmatpush.bf16.msra.mxu0 %v1278
    %1684 = vmatpush.bf16.msra.mxu0 %v1270
    %1685 = vmatpush.bf16.msra.mxu0 %v1262
    %1686 = vmatpush.bf16.msra.mxu0 %v1254
    %1687 = vmatpush.bf16.msra.mxu0 %v1246
    %1688 = vmatmul.bf16.gmra.mxu0 %v327
    %v1689 = vpop.f32.mrf.mxu0
    %v1690 = vadd.f32 %v1677, %v1689
    %v1691 = vpop.f32.mrf.mxu0
    %1692 = vdwg.mxu0
    %1693 = vmatpush.bf16.msra.mxu0 %v1175
    %1694 = vmatpush.bf16.msra.mxu0 %v1167
    %1695 = vmatpush.bf16.msra.mxu0 %v1159
    %1696 = vmatpush.bf16.msra.mxu0 %v1151
    %1697 = vmatpush.bf16.msra.mxu0 %v1143
    %1698 = vmatpush.bf16.msra.mxu0 %v1135
    %1699 = vmatpush.bf16.msra.mxu0 %v1127
    %1700 = vmatpush.bf16.msra.mxu0 %v1119
    %1701 = vmatmul.bf16.gmra.mxu0 %v325
    %v1702 = vpop.f32.mrf.mxu0
    %v1703 = vadd.f32 %v527, %v1702
    %v1704 = vpop.f32.mrf.mxu0
    %1705 = vdwg.mxu0
    %1706 = vmatpush.bf16.msra.mxu0 %v1239
    %1707 = vmatpush.bf16.msra.mxu0 %v1231
    %1708 = vmatpush.bf16.msra.mxu0 %v1223
    %1709 = vmatpush.bf16.msra.mxu0 %v1215
    %1710 = vmatpush.bf16.msra.mxu0 %v1207
    %1711 = vmatpush.bf16.msra.mxu0 %v1199
    %1712 = vmatpush.bf16.msra.mxu0 %v1191
    %1713 = vmatpush.bf16.msra.mxu0 %v1183
    %1714 = vmatmul.bf16.gmra.mxu0 %v326
    %v1715 = vpop.f32.mrf.mxu0
    %v1716 = vadd.f32 %v1703, %v1715
    %v1717 = vpop.f32.mrf.mxu0
    %1718 = vdwg.mxu0
    %1719 = vmatpush.bf16.msra.mxu0 %v1303
    %1720 = vmatpush.bf16.msra.mxu0 %v1295
    %1721 = vmatpush.bf16.msra.mxu0 %v1287
    %1722 = vmatpush.bf16.msra.mxu0 %v1279
    %1723 = vmatpush.bf16.msra.mxu0 %v1271
    %1724 = vmatpush.bf16.msra.mxu0 %v1263
    %1725 = vmatpush.bf16.msra.mxu0 %v1255
    %1726 = vmatpush.bf16.msra.mxu0 %v1247
    %1727 = vmatmul.bf16.gmra.mxu0 %v327
    %v1728 = vpop.f32.mrf.mxu0
    %v1729 = vadd.f32 %v1716, %v1728
    %v1730 = vpop.f32.mrf.mxu0
    %1731 = vdwg.mxu0
    %1732 = vmatpush.bf16.msra.mxu0 %v1176
    %1733 = vmatpush.bf16.msra.mxu0 %v1168
    %1734 = vmatpush.bf16.msra.mxu0 %v1160
    %1735 = vmatpush.bf16.msra.mxu0 %v1152
    %1736 = vmatpush.bf16.msra.mxu0 %v1144
    %1737 = vmatpush.bf16.msra.mxu0 %v1136
    %1738 = vmatpush.bf16.msra.mxu0 %v1128
    %1739 = vmatpush.bf16.msra.mxu0 %v1120
    %1740 = vmatmul.bf16.gmra.mxu0 %v325
    %v1741 = vpop.f32.mrf.mxu0
    %v1742 = vadd.f32 %v528, %v1741
    %v1743 = vpop.f32.mrf.mxu0
    %1744 = vdwg.mxu0
    %1745 = vmatpush.bf16.msra.mxu0 %v1240
    %1746 = vmatpush.bf16.msra.mxu0 %v1232
    %1747 = vmatpush.bf16.msra.mxu0 %v1224
    %1748 = vmatpush.bf16.msra.mxu0 %v1216
    %1749 = vmatpush.bf16.msra.mxu0 %v1208
    %1750 = vmatpush.bf16.msra.mxu0 %v1200
    %1751 = vmatpush.bf16.msra.mxu0 %v1192
    %1752 = vmatpush.bf16.msra.mxu0 %v1184
    %1753 = vmatmul.bf16.gmra.mxu0 %v326
    %v1754 = vpop.f32.mrf.mxu0
    %v1755 = vadd.f32 %v1742, %v1754
    %v1756 = vpop.f32.mrf.mxu0
    %1757 = vdwg.mxu0
    %1758 = vmatpush.bf16.msra.mxu0 %v1304
    %1759 = vmatpush.bf16.msra.mxu0 %v1296
    %1760 = vmatpush.bf16.msra.mxu0 %v1288
    %1761 = vmatpush.bf16.msra.mxu0 %v1280
    %1762 = vmatpush.bf16.msra.mxu0 %v1272
    %1763 = vmatpush.bf16.msra.mxu0 %v1264
    %1764 = vmatpush.bf16.msra.mxu0 %v1256
    %1765 = vmatpush.bf16.msra.mxu0 %v1248
    %1766 = vmatmul.bf16.gmra.mxu0 %v327
    %v1767 = vpop.f32.mrf.mxu0
    %v1768 = vadd.f32 %v1755, %v1767
    %v1769 = vpop.f32.mrf.mxu0
    %1770 = vdwg.mxu0
    %1771 = vmatpush.bf16.msra.mxu0 %v1177
    %1772 = vmatpush.bf16.msra.mxu0 %v1169
    %1773 = vmatpush.bf16.msra.mxu0 %v1161
    %1774 = vmatpush.bf16.msra.mxu0 %v1153
    %1775 = vmatpush.bf16.msra.mxu0 %v1145
    %1776 = vmatpush.bf16.msra.mxu0 %v1137
    %1777 = vmatpush.bf16.msra.mxu0 %v1129
    %1778 = vmatpush.bf16.msra.mxu0 %v1121
    %1779 = vmatmul.bf16.gmra.mxu0 %v325
    %v1780 = vpop.f32.mrf.mxu0
    %v1781 = vadd.f32 %v529, %v1780
    %v1782 = vpop.f32.mrf.mxu0
    %1783 = vdwg.mxu0
    %1784 = vmatpush.bf16.msra.mxu0 %v1241
    %1785 = vmatpush.bf16.msra.mxu0 %v1233
    %1786 = vmatpush.bf16.msra.mxu0 %v1225
    %1787 = vmatpush.bf16.msra.mxu0 %v1217
    %1788 = vmatpush.bf16.msra.mxu0 %v1209
    %1789 = vmatpush.bf16.msra.mxu0 %v1201
    %1790 = vmatpush.bf16.msra.mxu0 %v1193
    %1791 = vmatpush.bf16.msra.mxu0 %v1185
    %1792 = vmatmul.bf16.gmra.mxu0 %v326
    %v1793 = vpop.f32.mrf.mxu0
    %v1794 = vadd.f32 %v1781, %v1793
    %v1795 = vpop.f32.mrf.mxu0
    %1796 = vdwg.mxu0
    %1797 = vmatpush.bf16.msra.mxu0 %v1305
    %1798 = vmatpush.bf16.msra.mxu0 %v1297
    %1799 = vmatpush.bf16.msra.mxu0 %v1289
    %1800 = vmatpush.bf16.msra.mxu0 %v1281
    %1801 = vmatpush.bf16.msra.mxu0 %v1273
    %1802 = vmatpush.bf16.msra.mxu0 %v1265
    %1803 = vmatpush.bf16.msra.mxu0 %v1257
    %1804 = vmatpush.bf16.msra.mxu0 %v1249
    %1805 = vmatmul.bf16.gmra.mxu0 %v327
    %v1806 = vpop.f32.mrf.mxu0
    %v1807 = vadd.f32 %v1794, %v1806
    %v1808 = vpop.f32.mrf.mxu0
    %1809 = vdwg.mxu0
    %v1810 = vxor.u32 %v1534, 2147483648
    %v1811 = vxor.u32 %v1573, 2147483648
    %v1812 = vmul.f32 %v1810, 1.442695
    %v1813 = vpow.pop %v1812
    %v1814 = vmul.f32 %v1811, 1.442695
    %v1815 = vpow.pop %v1814
    %v1816 = vadd.f32 %v1813, 1.0
    %v1817 = vadd.f32 %v1815, 1.0
    %v1818 = vrcp.pop %v1816
    %v1819 = vmul.f32 %v1816, %v1818
    %v1820 = vsub.f32 1.0, %v1819
    %v1821 = vmul.f32 %v1818, %v1820
    %v1822 = vadd.f32 %v1818, %v1821
    %vm1823 = vweird.f32 %v1816
    %vm1824 = vweird.f32 %v1818
    %vm1825 = vmor %vm1823, %vm1824
    %v1826 = vsel %vm1825, %v1818, %v1822
    %v1827 = vand.u32 2147483647, %v1816
    %vm1828 = vcmp.eq.f32.partialorder %v1827, 8.507059e+37
    %v1829 = vand.u32 %v1816, 2147483648
    %v1830 = vor.u32 1.1754944e-38, %v1829
    %v1831 = vsel %vm1828, %v1830, %v1826
    %v1832 = vmul.f32 1.0, %v1831
    %v1833 = vrcp.pop %v1817
    %v1834 = vmul.f32 %v1817, %v1833
    %v1835 = vsub.f32 1.0, %v1834
    %v1836 = vmul.f32 %v1833, %v1835
    %v1837 = vadd.f32 %v1833, %v1836
    %vm1838 = vweird.f32 %v1817
    %vm1839 = vweird.f32 %v1833
    %vm1840 = vmor %vm1838, %vm1839
    %v1841 = vsel %vm1840, %v1833, %v1837
    %v1842 = vand.u32 2147483647, %v1817
    %vm1843 = vcmp.eq.f32.partialorder %v1842, 8.507059e+37
    %v1844 = vand.u32 %v1817, 2147483648
    %v1845 = vor.u32 1.1754944e-38, %v1844
    %v1846 = vsel %vm1843, %v1845, %v1841
    %v1847 = vmul.f32 1.0, %v1846
    %v1848 = vxor.u32 %v1612, 2147483648
    %v1849 = vxor.u32 %v1651, 2147483648
    %v1850 = vmul.f32 %v1848, 1.442695
    %v1851 = vpow.pop %v1850
    %v1852 = vmul.f32 %v1849, 1.442695
    %v1853 = vpow.pop %v1852
    %v1854 = vadd.f32 %v1851, 1.0
    %v1855 = vadd.f32 %v1853, 1.0
    %v1856 = vrcp.pop %v1854
    %v1857 = vmul.f32 %v1854, %v1856
    %v1858 = vsub.f32 1.0, %v1857
    %v1859 = vmul.f32 %v1856, %v1858
    %v1860 = vadd.f32 %v1856, %v1859
    %vm1861 = vweird.f32 %v1854
    %vm1862 = vweird.f32 %v1856
    %vm1863 = vmor %vm1861, %vm1862
    %v1864 = vsel %vm1863, %v1856, %v1860
    %v1865 = vand.u32 2147483647, %v1854
    %vm1866 = vcmp.eq.f32.partialorder %v1865, 8.507059e+37
    %v1867 = vand.u32 %v1854, 2147483648
    %v1868 = vor.u32 1.1754944e-38, %v1867
    %v1869 = vsel %vm1866, %v1868, %v1864
    %v1870 = vmul.f32 1.0, %v1869
    %v1871 = vrcp.pop %v1855
    %v1872 = vmul.f32 %v1855, %v1871
    %v1873 = vsub.f32 1.0, %v1872
    %v1874 = vmul.f32 %v1871, %v1873
    %v1875 = vadd.f32 %v1871, %v1874
    %vm1876 = vweird.f32 %v1855
    %vm1877 = vweird.f32 %v1871
    %vm1878 = vmor %vm1876, %vm1877
    %v1879 = vsel %vm1878, %v1871, %v1875
    %v1880 = vand.u32 2147483647, %v1855
    %vm1881 = vcmp.eq.f32.partialorder %v1880, 8.507059e+37
    %v1882 = vand.u32 %v1855, 2147483648
    %v1883 = vor.u32 1.1754944e-38, %v1882
    %v1884 = vsel %vm1881, %v1883, %v1879
    %v1885 = vmul.f32 1.0, %v1884
    %v1886 = vtanh.pop %v1690
    %v1887 = vtanh.pop %v1729
    %v1888 = vxor.u32 %v1768, 2147483648
    %v1889 = vxor.u32 %v1807, 2147483648
    %v1890 = vmul.f32 %v1888, 1.442695
    %v1891 = vpow.pop %v1890
    %v1892 = vmul.f32 %v1889, 1.442695
    %v1893 = vpow.pop %v1892
    %v1894 = vadd.f32 %v1891, 1.0
    %v1895 = vadd.f32 %v1893, 1.0
    %v1896 = vrcp.pop %v1894
    %v1897 = vmul.f32 %v1894, %v1896
    %v1898 = vsub.f32 1.0, %v1897
    %v1899 = vmul.f32 %v1896, %v1898
    %v1900 = vadd.f32 %v1896, %v1899
    %vm1901 = vweird.f32 %v1894
    %vm1902 = vweird.f32 %v1896
    %vm1903 = vmor %vm1901, %vm1902
    %v1904 = vsel %vm1903, %v1896, %v1900
    %v1905 = vand.u32 2147483647, %v1894
    %vm1906 = vcmp.eq.f32.partialorder %v1905, 8.507059e+37
    %v1907 = vand.u32 %v1894, 2147483648
    %v1908 = vor.u32 1.1754944e-38, %v1907
    %v1909 = vsel %vm1906, %v1908, %v1904
    %v1910 = vmul.f32 1.0, %v1909
    %v1911 = vrcp.pop %v1895
    %v1912 = vmul.f32 %v1895, %v1911
    %v1913 = vsub.f32 1.0, %v1912
    %v1914 = vmul.f32 %v1911, %v1913
    %v1915 = vadd.f32 %v1911, %v1914
    %vm1916 = vweird.f32 %v1895
    %vm1917 = vweird.f32 %v1911
    %vm1918 = vmor %vm1916, %vm1917
    %v1919 = vsel %vm1918, %v1911, %v1915
    %v1920 = vand.u32 2147483647, %v1895
    %vm1921 = vcmp.eq.f32.partialorder %v1920, 8.507059e+37
    %v1922 = vand.u32 %v1895, 2147483648
    %v1923 = vor.u32 1.1754944e-38, %v1922
    %v1924 = vsel %vm1921, %v1923, %v1919
    %v1925 = vmul.f32 1.0, %v1924
    %v1926 = vld [vmem:[%s7] sm:$0xf]
    %1928 = vst [vmem:[#allocation1] ss:$4 sm:$0xff] %v1926
    %v1929 = vld.sshfl [vmem:[#allocation1] sm:$0xff pattern:$0x73625140]
    %v1930 = vld.sshfl [vmem:[#allocation1 + $0x8] sm:$0xff pattern:$0x73625140]
    %v1933 = vmul.f32 %v1870, %v1929
    %v1934 = vmul.f32 %v1885, %v1930
    %v1935 = vmul.f32 %v1832, %v1886
    %v1936 = vmul.f32 %v1847, %v1887
    %v1937 = vadd.f32 %v1933, %v1935
    %v1938 = vadd.f32 %v1934, %v1936
    %v1939 = vtanh.pop %v1937
    %v1940 = vtanh.pop %v1938
    %v1941 = vmul.f32 %v1910, %v1939
    %v1942 = vmul.f32 %v1925, %v1940
    %v1943 = vpack.c.bf16 %v1941, %v1941
    %v1944 = vpack.c.bf16 %v1942, %v1942
    %v1945 = vld [vmem:[#allocation4] sm:$0xf]
    %v1946 = vld [vmem:[#allocation4 + $0x4] sm:$0xf]
    %v1947 = vld [vmem:[#allocation4 + $0x8] sm:$0xf]
    %v1948 = vld [vmem:[#allocation4 + $0xc] sm:$0xf]
    %v1949 = vld [vmem:[#allocation4 + $0x10] sm:$0xf]
    %v1950 = vld [vmem:[#allocation4 + $0x14] sm:$0xf]
    %v1951 = vld [vmem:[#allocation4 + $0x18] sm:$0xf]
    %v1952 = vld [vmem:[#allocation4 + $0x1c] sm:$0xf]
    %v1953 = vld [vmem:[#allocation4 + $0x20] sm:$0xf]
    %v1954 = vld [vmem:[#allocation4 + $0x24] sm:$0xf]
    %v1955 = vld [vmem:[#allocation4 + $0x28] sm:$0xf]
    %v1956 = vld [vmem:[#allocation4 + $0x2c] sm:$0xf]
    %v1957 = vld [vmem:[#allocation4 + $0x30] sm:$0xf]
    %v1958 = vld [vmem:[#allocation4 + $0x34] sm:$0xf]
    %v1959 = vld [vmem:[#allocation4 + $0x38] sm:$0xf]
    %v1960 = vld [vmem:[#allocation4 + $0x3c] sm:$0xf]
    %v1961 = vld [vmem:[#allocation4 + $0x40] sm:$0xf]
    %v1962 = vld [vmem:[#allocation4 + $0x44] sm:$0xf]
    %v1963 = vld [vmem:[#allocation4 + $0x48] sm:$0xf]
    %v1964 = vld [vmem:[#allocation4 + $0x4c] sm:$0xf]
    %v1965 = vld [vmem:[#allocation4 + $0x50] sm:$0xf]
    %v1966 = vld [vmem:[#allocation4 + $0x54] sm:$0xf]
    %v1967 = vld [vmem:[#allocation4 + $0x58] sm:$0xf]
    %v1968 = vld [vmem:[#allocation4 + $0x5c] sm:$0xf]
    %v1969 = vld [vmem:[#allocation4 + $0x60] sm:$0xf]
    %v1970 = vld [vmem:[#allocation4 + $0x64] sm:$0xf]
    %v1971 = vld [vmem:[#allocation4 + $0x68] sm:$0xf]
    %v1972 = vld [vmem:[#allocation4 + $0x6c] sm:$0xf]
    %v1973 = vld [vmem:[#allocation4 + $0x70] sm:$0xf]
    %v1974 = vld [vmem:[#allocation4 + $0x74] sm:$0xf]
    %v1975 = vld [vmem:[#allocation4 + $0x78] sm:$0xf]
    %v1976 = vld [vmem:[#allocation4 + $0x7c] sm:$0xf]
    %v1977 = vld [vmem:[%s9] sm:$0x1]
    %v1979 = vperm.slane %v1977, 0
    %v2013 = vunpack.c.l.b16 %v1945
    %v2014 = vunpack.c.l.b16 %v1946
    %v2015 = vunpack.c.l.b16 %v1947
    %v2016 = vunpack.c.l.b16 %v1948
    %v2017 = vunpack.c.l.b16 %v1949
    %v2018 = vunpack.c.l.b16 %v1950
    %v2019 = vunpack.c.l.b16 %v1951
    %v2020 = vunpack.c.l.b16 %v1952
    %v2021 = vunpack.c.l.b16 %v1953
    %v2022 = vunpack.c.l.b16 %v1954
    %v2023 = vunpack.c.l.b16 %v1955
    %v2024 = vunpack.c.l.b16 %v1956
    %v2025 = vunpack.c.l.b16 %v1957
    %v2026 = vunpack.c.l.b16 %v1958
    %v2027 = vunpack.c.l.b16 %v1959
    %v2028 = vunpack.c.l.b16 %v1960
    %v2029 = vunpack.c.l.b16 %v1961
    %v2030 = vunpack.c.l.b16 %v1962
    %v2031 = vunpack.c.l.b16 %v1963
    %v2032 = vunpack.c.l.b16 %v1964
    %v2033 = vunpack.c.l.b16 %v1965
    %v2034 = vunpack.c.l.b16 %v1966
    %v2035 = vunpack.c.l.b16 %v1967
    %v2036 = vunpack.c.l.b16 %v1968
    %v2037 = vunpack.c.l.b16 %v1969
    %v2038 = vunpack.c.l.b16 %v1970
    %v2039 = vunpack.c.l.b16 %v1971
    %v2040 = vunpack.c.l.b16 %v1972
    %v2041 = vunpack.c.l.b16 %v1973
    %v2042 = vunpack.c.l.b16 %v1974
    %v2043 = vunpack.c.l.b16 %v1975
    %v2044 = vunpack.c.l.b16 %v1976
    %v2045 = vpack.c.b16 %v2014, %v2013
    %v2046 = vpack.c.b16 %v2016, %v2015
    %v2047 = vpack.c.b16 %v2018, %v2017
    %v2048 = vpack.c.b16 %v2020, %v2019
    %v2049 = vpack.c.b16 %v2022, %v2021
    %v2050 = vpack.c.b16 %v2024, %v2023
    %v2051 = vpack.c.b16 %v2026, %v2025
    %v2052 = vpack.c.b16 %v2028, %v2027
    %v2053 = vpack.c.b16 %v2030, %v2029
    %v2054 = vpack.c.b16 %v2032, %v2031
    %v2055 = vpack.c.b16 %v2034, %v2033
    %v2056 = vpack.c.b16 %v2036, %v2035
    %v2057 = vpack.c.b16 %v2038, %v2037
    %v2058 = vpack.c.b16 %v2040, %v2039
    %v2059 = vpack.c.b16 %v2042, %v2041
    %v2060 = vpack.c.b16 %v2044, %v2043
    %2077 = vmatpush.bf16.msra.mxu0 %v2052
    %2078 = vmatpush.bf16.msra.mxu0 %v2051
    %2079 = vmatpush.bf16.msra.mxu0 %v2050
    %2080 = vmatpush.bf16.msra.mxu0 %v2049
    %2081 = vmatpush.bf16.msra.mxu0 %v2048
    %2082 = vmatpush.bf16.msra.mxu0 %v2047
    %2083 = vmatpush.bf16.msra.mxu0 %v2046
    %2084 = vmatpush.bf16.msra.mxu0 %v2045
    %2085 = vmatmul.bf16.gmra.mxu0 %v1943
    %v2086 = vpop.f32.mrf.mxu0
    %v2087 = vadd.f32 %v1979, %v2086
    %v2088 = vpop.f32.mrf.mxu0
    %2089 = vdwg.mxu0
    %2090 = vmatpush.bf16.msra.mxu0 %v2060
    %2091 = vmatpush.bf16.msra.mxu0 %v2059
    %2092 = vmatpush.bf16.msra.mxu0 %v2058
    %2093 = vmatpush.bf16.msra.mxu0 %v2057
    %2094 = vmatpush.bf16.msra.mxu0 %v2056
    %2095 = vmatpush.bf16.msra.mxu0 %v2055
    %2096 = vmatpush.bf16.msra.mxu0 %v2054
    %2097 = vmatpush.bf16.msra.mxu0 %v2053
    %2098 = vmatmul.bf16.gmra.mxu0 %v1944
    %v2099 = vpop.f32.mrf.mxu0
    %v2100 = vadd.f32 %v2087, %v2099
    %v2101 = vpop.f32.mrf.mxu0
    %2102 = vdwg.mxu0
    %2103 = vst [vmem:[%s10] sm:$0x3] %v2100
    %v2106 = vrot.slane %v1942, 6
    %vm2107 = vcmask 1041408
    %v2108 = vsel %vm2107, %v1941, %v2106
    %2110 = vst [vmem:[%s11] sm:$0xf] %v2108
    %v2113 = vrot.slane %v1938, 6
    %v2114 = vsel %vm2107, %v1937, %v2113
    %2116 = vst [vmem:[%s12] sm:$0xf] %v2114
    // Predicated region
    $region50: #{_forward_impl.1} parent=1 // pred_check
      _
    $region51: #{_forward_impl.1} parent=1 // pred_check_branch
      %2118 = sbr.rel (0) target = $region53
    $region52: #{_forward_impl.1} parent=1 // pred_region
      _
    $region53: #{_forward_impl.1} parent=1 // pred_fallthru
      _
    // Predicated region
    $region54: #{_forward_impl.1} parent=1 // pred_check
      _
    $region55: #{_forward_impl.1} parent=1 // pred_check_branch
      %2120 = sbr.rel (0) target = $region57
    $region56: #{_forward_impl.1} parent=1 // pred_region
      _
    $region57: #{_forward_impl.1} parent=1 // pred_fallthru
      _
    // Predicated region
    $region58: #{_forward_impl.1} parent=1 // pred_check
      _
    $region59: #{_forward_impl.1} parent=1 // pred_check_branch
      %2122 = sbr.rel (0) target = $region61
    $region60: #{_forward_impl.1} parent=1 // pred_region
      _
    $region61: #{_forward_impl.1} parent=1 // pred_fallthru
      _
    // Predicated region
    $region62: #{_forward_impl.1} parent=1 // pred_check
      _
    $region63: #{_forward_impl.1} parent=1 // pred_check_branch
      %2124 = sbr.rel (0) target = $region65
    $region64: #{_forward_impl.1} parent=1 // pred_region
      _
    $region65: #{_forward_impl.1} parent=1 // pred_fallthru
      _
    // Predicated region
    $region66: #{_forward_impl.1} parent=1 // pred_check
      _
    $region67: #{_forward_impl.1} parent=1 // pred_check_branch
      %2126 = sbr.rel (0) target = $region69
    $region68: #{_forward_impl.1} parent=1 // pred_region
      _
    $region69: #{_forward_impl.1} parent=1 // pred_fallthru
      _
    // Predicated region
    $region70: #{_forward_impl.1} parent=1 // pred_check
      _
    $region71: #{_forward_impl.1} parent=1 // pred_check_branch
      %2128 = sbr.rel (0) target = $region73
    $region72: #{_forward_impl.1} parent=1 // pred_region
      _
    $region73: #{_forward_impl.1} parent=1 // pred_fallthru
      _
    %2129 = vsyncpa [#allocation3], 1
    %2130 = vsyncpa [#allocation5], 1

</llo_original>
